<compile_context>
chip_gen: v7x
topology: tpu7x:2x2x1
jax: 0.10.0
libtpu: 0.0.40
codegen_flags: <defaults>
</compile_context>

<pallas_src>
import jax
import jax.numpy as jnp
from jax.experimental import pallas as pl
from jax.experimental.pallas import tpu as pltpu

# Model dimensions (torch_dataset_cancer.n_input_layer unavailable; use a small
# synthetic size consistent with the module structure).
N_INPUT = 128
FACTOR = 0.25
H1 = int(N_INPUT * FACTOR)        # 32
H2 = int(N_INPUT * FACTOR ** 2)   # 8
LATENT = 2
L2 = 2 * LATENT                   # fused mu|logvar width = 4
BN_EPS = 1e-5

# Row indices of the packed bias/gamma/beta table (each row is 128-lane padded).
_B1, _G1, _BE1 = 0, 1, 2
_B2, _G2, _BE2 = 3, 4, 5
_B3, _G3, _BE3 = 6, 7, 8          # fused fc31|fc32
_B4, _G4, _BE4 = 9, 10, 11
_B5, _G5, _BE5 = 12, 13, 14
_B6 = 15
_N_VEC_ROWS = 16


def _bn_train(h, gamma, beta):
    """BatchNorm1d, training mode: one reduction pass, fused scale/shift."""
    mean = jnp.mean(h, axis=0, keepdims=True)
    mean_sq = jnp.mean(h * h, axis=0, keepdims=True)
    var = mean_sq - mean * mean                   # biased variance (PyTorch)
    scale = gamma * jax.lax.rsqrt(var + BN_EPS)
    shift = beta - mean * scale
    return h * scale + shift


def _vpu_lin(h, w, b):
    """Tiny-contraction linear layer on the VPU (no MXU fill/drain latency).

    out[r, n] = sum_k h[r, k] * w[k, n] + b[0, n], fully unrolled over K.
    """
    acc = h[:, 0:1] * w[0:1, :] + b
    for k in range(1, w.shape[0]):
        acc = acc + h[:, k:k + 1] * w[k:k + 1, :]
    return acc


def vae_kernel(x_ref, eps_ref, w_ref, v_ref, recon_ref, lat_ref):
    x = x_ref[...]
    eps = eps_ref[...]

    # ---------------- encode ----------------
    # fc1: (B,128) @ (128,32) -> MXU.
    pre1 = jnp.dot(x, w_ref[0, :, 0:H1],
                   preferred_element_type=jnp.float32) + v_ref[_B1:_B1 + 1, 0:H1]
    h1 = _bn_train(jnp.maximum(pre1, 0.0),
                   v_ref[_G1:_G1 + 1, 0:H1], v_ref[_BE1:_BE1 + 1, 0:H1])

    # fc2: K=32, N=8 -> VPU.
    pre2 = _vpu_lin(h1, w_ref[1, 0:H1, 0:H2], v_ref[_B2:_B2 + 1, 0:H2])
    h2 = _bn_train(jnp.maximum(pre2, 0.0),
                   v_ref[_G2:_G2 + 1, 0:H2], v_ref[_BE2:_BE2 + 1, 0:H2])

    # fc31|fc32 fused: one K=8, N=4 VPU matmul + one BatchNorm over (B,4).
    ml = _bn_train(_vpu_lin(h2, w_ref[2, 0:H2, 0:L2], v_ref[_B3:_B3 + 1, 0:L2]),
                   v_ref[_G3:_G3 + 1, 0:L2], v_ref[_BE3:_BE3 + 1, 0:L2])
    mu = ml[:, 0:LATENT]
    logvar = ml[:, LATENT:L2]

    # ---------------- reparameterize (eps supplied from host) ----------------
    z = eps * jnp.exp(0.5 * logvar) + mu

    # ---------------- decode ----------------
    # fc4: K=2, N=8 -> VPU.
    pre4 = _vpu_lin(z, w_ref[3, 0:LATENT, 0:H2], v_ref[_B4:_B4 + 1, 0:H2])
    h4 = _bn_train(jnp.maximum(pre4, 0.0),
                   v_ref[_G4:_G4 + 1, 0:H2], v_ref[_BE4:_BE4 + 1, 0:H2])

    # fc5: K=8, N=32 -> VPU.
    pre5 = _vpu_lin(h4, w_ref[4, 0:H2, 0:H1], v_ref[_B5:_B5 + 1, 0:H1])
    h5 = _bn_train(jnp.maximum(pre5, 0.0),
                   v_ref[_G5:_G5 + 1, 0:H1], v_ref[_BE5:_BE5 + 1, 0:H1])

    # fc6: (B,32) @ (32,128) -> MXU; sigmoid = EUP exp + approx reciprocal.
    pre6 = jnp.dot(h5, w_ref[5, 0:H1, :],
                   preferred_element_type=jnp.float32) + v_ref[_B6:_B6 + 1, :]
    recon_ref[...] = pl.reciprocal(1.0 + jnp.exp(-pre6), approx=True)

    # Pack [z | mu | logvar] into one lane-dense (B,128) output with pure
    # broadcast+select placement (no unaligned lane stores, one full store).
    col = jax.lax.broadcasted_iota(jnp.int32, lat_ref.shape, 1)
    lat = jnp.zeros(lat_ref.shape, jnp.float32)
    for j in range(LATENT):
        lat = lat + jnp.where(col == j, z[:, j:j + 1], 0.0)                      # z
        lat = lat + jnp.where(col == LATENT + j, ml[:, j:j + 1], 0.0)            # mu
        lat = lat + jnp.where(col == 2 * LATENT + j,
                              ml[:, LATENT + j:LATENT + j + 1], 0.0)             # logvar
    lat_ref[...] = lat


def init_params(key):
    """PyTorch-like init: Linear W,b ~ U(-1/sqrt(fan_in), 1/sqrt(fan_in)),
    BatchNorm gamma=1, beta=0. Weights stored transposed as (in, out)."""
    specs = [("fc1", N_INPUT, H1, True), ("fc2", H1, H2, True),
             ("fc31", H2, LATENT, True), ("fc32", H2, LATENT, True),
             ("fc4", LATENT, H2, True), ("fc5", H2, H1, True),
             ("fc6", H1, N_INPUT, False)]
    layers = {}
    keys = jax.random.split(key, len(specs))
    for k, (name, din, dout, has_bn) in zip(keys, specs):
        kw, kb = jax.random.split(k)
        bound = 1.0 / (din ** 0.5)
        layers[name] = {
            "w": jax.random.uniform(kw, (din, dout), jnp.float32, -bound, bound),
            "b": jax.random.uniform(kb, (dout,), jnp.float32, -bound, bound),
        }
        if has_bn:
            layers[name]["gamma"] = jnp.ones((dout,), jnp.float32)
            layers[name]["beta"] = jnp.zeros((dout,), jnp.float32)
    return layers


def pack_params(layers):
    """Fuse fc31|fc32 and pack all parameters into two lane-padded arrays:
    w_pack (6,128,128) weight slab, v_pack (16,128) bias/gamma/beta table."""
    w3f = jnp.concatenate([layers["fc31"]["w"], layers["fc32"]["w"]], axis=1)
    b3f = jnp.concatenate([layers["fc31"]["b"], layers["fc32"]["b"]])
    g3f = jnp.concatenate([layers["fc31"]["gamma"], layers["fc32"]["gamma"]])
    be3f = jnp.concatenate([layers["fc31"]["beta"], layers["fc32"]["beta"]])

    weights = [layers["fc1"]["w"], layers["fc2"]["w"], w3f,
               layers["fc4"]["w"], layers["fc5"]["w"], layers["fc6"]["w"]]
    vecs = [layers["fc1"]["b"], layers["fc1"]["gamma"], layers["fc1"]["beta"],
            layers["fc2"]["b"], layers["fc2"]["gamma"], layers["fc2"]["beta"],
            b3f, g3f, be3f,
            layers["fc4"]["b"], layers["fc4"]["gamma"], layers["fc4"]["beta"],
            layers["fc5"]["b"], layers["fc5"]["gamma"], layers["fc5"]["beta"],
            layers["fc6"]["b"]]
    assert len(vecs) == _N_VEC_ROWS

    def pad_w(w):
        return jnp.pad(w, ((0, N_INPUT - w.shape[0]), (0, N_INPUT - w.shape[1])))

    w_pack = jnp.stack([pad_w(w) for w in weights])                              # (6,128,128)
    v_pack = jnp.stack([jnp.pad(v, (0, N_INPUT - v.shape[0])) for v in vecs])    # (16,128)
    return w_pack, v_pack


def vae_forward(x, eps, w_pack, v_pack):
    B = x.shape[0]
    vmem = pl.BlockSpec(memory_space=pltpu.MemorySpace.VMEM)
    recon, lat = pl.pallas_call(
        vae_kernel,
        out_shape=(jax.ShapeDtypeStruct((B, N_INPUT), jnp.float32),   # reconstruction
                   jax.ShapeDtypeStruct((B, N_INPUT), jnp.float32)),  # packed z|mu|logvar
        in_specs=[vmem, vmem, vmem, vmem],
        out_specs=(vmem, vmem),
    )(x, eps, w_pack, v_pack)
    z = lat[:, 0:LATENT]
    mu = lat[:, LATENT:2 * LATENT]
    logvar = lat[:, 2 * LATENT:3 * LATENT]
    return recon, z, mu, logvar


if __name__ == "__main__":
    key = jax.random.PRNGKey(0)
    kx, keps, kp = jax.random.split(key, 3)

    B = 8
    x = jax.random.uniform(kx, (B, N_INPUT), dtype=jnp.float32)
    # eps ~ N(0, 1) for the reparameterization trick (torch.randn_like).
    eps = jax.random.normal(keps, (B, LATENT), dtype=jnp.float32)
    w_pack, v_pack = pack_params(init_params(kp))

    recon, z, mu, logvar = jax.jit(vae_forward)(x, eps, w_pack, v_pack)
    jax.block_until_ready((recon, z, mu, logvar))

    assert recon.shape == (B, N_INPUT)
    assert z.shape == (B, LATENT) and mu.shape == (B, LATENT) and logvar.shape == (B, LATENT)
    print("KERNEL_OK")
</pallas_src>

<mosaic_0001>
module attributes {stable_mosaic.version = 11 : i64} {
  func.func @vae_kernel(%arg0: memref<8x128xf32, #tpu.memory_space<vmem>>, %arg1: memref<8x2xf32, #tpu.memory_space<vmem>>, %arg2: memref<6x128x128xf32, #tpu.memory_space<vmem>>, %arg3: memref<16x128xf32, #tpu.memory_space<vmem>>, %arg4: memref<8x128xf32, #tpu.memory_space<vmem>>, %arg5: memref<8x128xf32, #tpu.memory_space<vmem>>) attributes {dimension_semantics = [], scalar_prefetch = 0 : i64, scratch_operands = 0 : i64, tpu.core_type = #tpu.core_type<tc>} {
    %c0 = arith.constant 0 : index
    %c0_0 = arith.constant 0 : index
    %0 = vector.load %arg0[%c0, %c0_0] : memref<8x128xf32, #tpu.memory_space<vmem>>, vector<8x128xf32>
    %c0_1 = arith.constant 0 : index
    %c0_2 = arith.constant 0 : index
    %1 = vector.load %arg1[%c0_1, %c0_2] : memref<8x2xf32, #tpu.memory_space<vmem>>, vector<8x2xf32>
    %c0_3 = arith.constant 0 : index
    %c0_4 = arith.constant 0 : index
    %c0_5 = arith.constant 0 : index
    %2 = vector.load %arg2[%c0_3, %c0_4, %c0_5] : memref<6x128x128xf32, #tpu.memory_space<vmem>>, vector<1x128x32xf32>
    %3 = vector.shape_cast %2 : vector<1x128x32xf32> to vector<128x32xf32>
    %cst = arith.constant dense<0.000000e+00> : vector<8x32xf32>
    %4 = tpu.matmul %0, %3, %cst {dimension_numbers = #tpu.dot_dimension_numbers<[1], [0], [0], [1], [0, 0, 1, 1], [], []>} : vector<8x128xf32>, vector<128x32xf32>, vector<8x32xf32> -> vector<8x32xf32>
    %c0_6 = arith.constant 0 : index
    %c0_7 = arith.constant 0 : index
    %5 = vector.load %arg3[%c0_6, %c0_7] : memref<16x128xf32, #tpu.memory_space<vmem>>, vector<1x32xf32>
    %6 = vector.broadcast %5 : vector<1x32xf32> to vector<8x32xf32>
    %7 = arith.addf %4, %6 : vector<8x32xf32>
    %cst_8 = arith.constant 0.000000e+00 : f32
    %8 = vector.broadcast %cst_8 : f32 to vector<8x32xf32>
    %9 = arith.maximumf %7, %8 : vector<8x32xf32>
    %c1 = arith.constant 1 : index
    %c0_9 = arith.constant 0 : index
    %10 = vector.load %arg3[%c1, %c0_9] : memref<16x128xf32, #tpu.memory_space<vmem>>, vector<1x32xf32>
    %c2 = arith.constant 2 : index
    %c0_10 = arith.constant 0 : index
    %11 = vector.load %arg3[%c2, %c0_10] : memref<16x128xf32, #tpu.memory_space<vmem>>, vector<1x32xf32>
    %cst_11 = arith.constant dense<0.000000e+00> : vector<32xf32>
    %12 = vector.multi_reduction <add>, %9, %cst_11 [0] : vector<8x32xf32> to vector<32xf32>
    %13 = vector.shape_cast %12 : vector<32xf32> to vector<1x32xf32>
    %cst_12 = arith.constant 8.000000e+00 : f32
    %14 = vector.broadcast %cst_12 : f32 to vector<1x32xf32>
    %15 = arith.divf %13, %14 : vector<1x32xf32>
    %16 = arith.mulf %9, %9 : vector<8x32xf32>
    %cst_13 = arith.constant dense<0.000000e+00> : vector<32xf32>
    %17 = vector.multi_reduction <add>, %16, %cst_13 [0] : vector<8x32xf32> to vector<32xf32>
    %18 = vector.shape_cast %17 : vector<32xf32> to vector<1x32xf32>
    %cst_14 = arith.constant 8.000000e+00 : f32
    %19 = vector.broadcast %cst_14 : f32 to vector<1x32xf32>
    %20 = arith.divf %18, %19 : vector<1x32xf32>
    %21 = arith.mulf %15, %15 : vector<1x32xf32>
    %22 = arith.subf %20, %21 : vector<1x32xf32>
    %cst_15 = arith.constant 9.99999974E-6 : f32
    %23 = vector.broadcast %cst_15 : f32 to vector<1x32xf32>
    %24 = arith.addf %22, %23 : vector<1x32xf32>
    %25 = math.rsqrt %24 : vector<1x32xf32>
    %26 = arith.mulf %10, %25 : vector<1x32xf32>
    %27 = arith.mulf %15, %26 : vector<1x32xf32>
    %28 = arith.subf %11, %27 : vector<1x32xf32>
    %29 = vector.broadcast %26 : vector<1x32xf32> to vector<8x32xf32>
    %30 = arith.mulf %9, %29 : vector<8x32xf32>
    %31 = vector.broadcast %28 : vector<1x32xf32> to vector<8x32xf32>
    %32 = arith.addf %30, %31 : vector<8x32xf32>
    %c1_16 = arith.constant 1 : index
    %c0_17 = arith.constant 0 : index
    %c0_18 = arith.constant 0 : index
    %33 = vector.load %arg2[%c1_16, %c0_17, %c0_18] : memref<6x128x128xf32, #tpu.memory_space<vmem>>, vector<1x32x8xf32>
    %34 = vector.shape_cast %33 : vector<1x32x8xf32> to vector<32x8xf32>
    %c3 = arith.constant 3 : index
    %c0_19 = arith.constant 0 : index
    %35 = vector.load %arg3[%c3, %c0_19] : memref<16x128xf32, #tpu.memory_space<vmem>>, vector<1x8xf32>
    %36 = vector.extract_strided_slice %32 {offsets = [0, 0], sizes = [8, 1], strides = [1, 1]} : vector<8x32xf32> to vector<8x1xf32>
    %37 = vector.extract_strided_slice %34 {offsets = [0, 0], sizes = [1, 8], strides = [1, 1]} : vector<32x8xf32> to vector<1x8xf32>
    %38 = vector.broadcast %36 : vector<8x1xf32> to vector<8x8xf32>
    %39 = vector.broadcast %37 : vector<1x8xf32> to vector<8x8xf32>
    %40 = arith.mulf %38, %39 : vector<8x8xf32>
    %41 = vector.broadcast %35 : vector<1x8xf32> to vector<8x8xf32>
    %42 = arith.addf %40, %41 : vector<8x8xf32>
    %43 = vector.extract_strided_slice %32 {offsets = [0, 1], sizes = [8, 1], strides = [1, 1]} : vector<8x32xf32> to vector<8x1xf32>
    %44 = vector.extract_strided_slice %34 {offsets = [1, 0], sizes = [1, 8], strides = [1, 1]} : vector<32x8xf32> to vector<1x8xf32>
    %45 = vector.broadcast %43 : vector<8x1xf32> to vector<8x8xf32>
    %46 = vector.broadcast %44 : vector<1x8xf32> to vector<8x8xf32>
    %47 = arith.mulf %45, %46 : vector<8x8xf32>
    %48 = arith.addf %42, %47 : vector<8x8xf32>
    %49 = vector.extract_strided_slice %32 {offsets = [0, 2], sizes = [8, 1], strides = [1, 1]} : vector<8x32xf32> to vector<8x1xf32>
    %50 = vector.extract_strided_slice %34 {offsets = [2, 0], sizes = [1, 8], strides = [1, 1]} : vector<32x8xf32> to vector<1x8xf32>
    %51 = vector.broadcast %49 : vector<8x1xf32> to vector<8x8xf32>
    %52 = vector.broadcast %50 : vector<1x8xf32> to vector<8x8xf32>
    %53 = arith.mulf %51, %52 : vector<8x8xf32>
    %54 = arith.addf %48, %53 : vector<8x8xf32>
    %55 = vector.extract_strided_slice %32 {offsets = [0, 3], sizes = [8, 1], strides = [1, 1]} : vector<8x32xf32> to vector<8x1xf32>
    %56 = vector.extract_strided_slice %34 {offsets = [3, 0], sizes = [1, 8], strides = [1, 1]} : vector<32x8xf32> to vector<1x8xf32>
    %57 = vector.broadcast %55 : vector<8x1xf32> to vector<8x8xf32>
    %58 = vector.broadcast %56 : vector<1x8xf32> to vector<8x8xf32>
    %59 = arith.mulf %57, %58 : vector<8x8xf32>
    %60 = arith.addf %54, %59 : vector<8x8xf32>
    %61 = vector.extract_strided_slice %32 {offsets = [0, 4], sizes = [8, 1], strides = [1, 1]} : vector<8x32xf32> to vector<8x1xf32>
    %62 = vector.extract_strided_slice %34 {offsets = [4, 0], sizes = [1, 8], strides = [1, 1]} : vector<32x8xf32> to vector<1x8xf32>
    %63 = vector.broadcast %61 : vector<8x1xf32> to vector<8x8xf32>
    %64 = vector.broadcast %62 : vector<1x8xf32> to vector<8x8xf32>
    %65 = arith.mulf %63, %64 : vector<8x8xf32>
    %66 = arith.addf %60, %65 : vector<8x8xf32>
    %67 = vector.extract_strided_slice %32 {offsets = [0, 5], sizes = [8, 1], strides = [1, 1]} : vector<8x32xf32> to vector<8x1xf32>
    %68 = vector.extract_strided_slice %34 {offsets = [5, 0], sizes = [1, 8], strides = [1, 1]} : vector<32x8xf32> to vector<1x8xf32>
    %69 = vector.broadcast %67 : vector<8x1xf32> to vector<8x8xf32>
    %70 = vector.broadcast %68 : vector<1x8xf32> to vector<8x8xf32>
    %71 = arith.mulf %69, %70 : vector<8x8xf32>
    %72 = arith.addf %66, %71 : vector<8x8xf32>
    %73 = vector.extract_strided_slice %32 {offsets = [0, 6], sizes = [8, 1], strides = [1, 1]} : vector<8x32xf32> to vector<8x1xf32>
    %74 = vector.extract_strided_slice %34 {offsets = [6, 0], sizes = [1, 8], strides = [1, 1]} : vector<32x8xf32> to vector<1x8xf32>
    %75 = vector.broadcast %73 : vector<8x1xf32> to vector<8x8xf32>
    %76 = vector.broadcast %74 : vector<1x8xf32> to vector<8x8xf32>
    %77 = arith.mulf %75, %76 : vector<8x8xf32>
    %78 = arith.addf %72, %77 : vector<8x8xf32>
    %79 = vector.extract_strided_slice %32 {offsets = [0, 7], sizes = [8, 1], strides = [1, 1]} : vector<8x32xf32> to vector<8x1xf32>
    %80 = vector.extract_strided_slice %34 {offsets = [7, 0], sizes = [1, 8], strides = [1, 1]} : vector<32x8xf32> to vector<1x8xf32>
    %81 = vector.broadcast %79 : vector<8x1xf32> to vector<8x8xf32>
    %82 = vector.broadcast %80 : vector<1x8xf32> to vector<8x8xf32>
    %83 = arith.mulf %81, %82 : vector<8x8xf32>
    %84 = arith.addf %78, %83 : vector<8x8xf32>
    %85 = vector.extract_strided_slice %32 {offsets = [0, 8], sizes = [8, 1], strides = [1, 1]} : vector<8x32xf32> to vector<8x1xf32>
    %86 = vector.extract_strided_slice %34 {offsets = [8, 0], sizes = [1, 8], strides = [1, 1]} : vector<32x8xf32> to vector<1x8xf32>
    %87 = vector.broadcast %85 : vector<8x1xf32> to vector<8x8xf32>
    %88 = vector.broadcast %86 : vector<1x8xf32> to vector<8x8xf32>
    %89 = arith.mulf %87, %88 : vector<8x8xf32>
    %90 = arith.addf %84, %89 : vector<8x8xf32>
    %91 = vector.extract_strided_slice %32 {offsets = [0, 9], sizes = [8, 1], strides = [1, 1]} : vector<8x32xf32> to vector<8x1xf32>
    %92 = vector.extract_strided_slice %34 {offsets = [9, 0], sizes = [1, 8], strides = [1, 1]} : vector<32x8xf32> to vector<1x8xf32>
    %93 = vector.broadcast %91 : vector<8x1xf32> to vector<8x8xf32>
    %94 = vector.broadcast %92 : vector<1x8xf32> to vector<8x8xf32>
    %95 = arith.mulf %93, %94 : vector<8x8xf32>
    %96 = arith.addf %90, %95 : vector<8x8xf32>
    %97 = vector.extract_strided_slice %32 {offsets = [0, 10], sizes = [8, 1], strides = [1, 1]} : vector<8x32xf32> to vector<8x1xf32>
    %98 = vector.extract_strided_slice %34 {offsets = [10, 0], sizes = [1, 8], strides = [1, 1]} : vector<32x8xf32> to vector<1x8xf32>
    %99 = vector.broadcast %97 : vector<8x1xf32> to vector<8x8xf32>
    %100 = vector.broadcast %98 : vector<1x8xf32> to vector<8x8xf32>
    %101 = arith.mulf %99, %100 : vector<8x8xf32>
    %102 = arith.addf %96, %101 : vector<8x8xf32>
    %103 = vector.extract_strided_slice %32 {offsets = [0, 11], sizes = [8, 1], strides = [1, 1]} : vector<8x32xf32> to vector<8x1xf32>
    %104 = vector.extract_strided_slice %34 {offsets = [11, 0], sizes = [1, 8], strides = [1, 1]} : vector<32x8xf32> to vector<1x8xf32>
    %105 = vector.broadcast %103 : vector<8x1xf32> to vector<8x8xf32>
    %106 = vector.broadcast %104 : vector<1x8xf32> to vector<8x8xf32>
    %107 = arith.mulf %105, %106 : vector<8x8xf32>
    %108 = arith.addf %102, %107 : vector<8x8xf32>
    %109 = vector.extract_strided_slice %32 {offsets = [0, 12], sizes = [8, 1], strides = [1, 1]} : vector<8x32xf32> to vector<8x1xf32>
    %110 = vector.extract_strided_slice %34 {offsets = [12, 0], sizes = [1, 8], strides = [1, 1]} : vector<32x8xf32> to vector<1x8xf32>
    %111 = vector.broadcast %109 : vector<8x1xf32> to vector<8x8xf32>
    %112 = vector.broadcast %110 : vector<1x8xf32> to vector<8x8xf32>
    %113 = arith.mulf %111, %112 : vector<8x8xf32>
    %114 = arith.addf %108, %113 : vector<8x8xf32>
    %115 = vector.extract_strided_slice %32 {offsets = [0, 13], sizes = [8, 1], strides = [1, 1]} : vector<8x32xf32> to vector<8x1xf32>
    %116 = vector.extract_strided_slice %34 {offsets = [13, 0], sizes = [1, 8], strides = [1, 1]} : vector<32x8xf32> to vector<1x8xf32>
    %117 = vector.broadcast %115 : vector<8x1xf32> to vector<8x8xf32>
    %118 = vector.broadcast %116 : vector<1x8xf32> to vector<8x8xf32>
    %119 = arith.mulf %117, %118 : vector<8x8xf32>
    %120 = arith.addf %114, %119 : vector<8x8xf32>
    %121 = vector.extract_strided_slice %32 {offsets = [0, 14], sizes = [8, 1], strides = [1, 1]} : vector<8x32xf32> to vector<8x1xf32>
    %122 = vector.extract_strided_slice %34 {offsets = [14, 0], sizes = [1, 8], strides = [1, 1]} : vector<32x8xf32> to vector<1x8xf32>
    %123 = vector.broadcast %121 : vector<8x1xf32> to vector<8x8xf32>
    %124 = vector.broadcast %122 : vector<1x8xf32> to vector<8x8xf32>
    %125 = arith.mulf %123, %124 : vector<8x8xf32>
    %126 = arith.addf %120, %125 : vector<8x8xf32>
    %127 = vector.extract_strided_slice %32 {offsets = [0, 15], sizes = [8, 1], strides = [1, 1]} : vector<8x32xf32> to vector<8x1xf32>
    %128 = vector.extract_strided_slice %34 {offsets = [15, 0], sizes = [1, 8], strides = [1, 1]} : vector<32x8xf32> to vector<1x8xf32>
    %129 = vector.broadcast %127 : vector<8x1xf32> to vector<8x8xf32>
    %130 = vector.broadcast %128 : vector<1x8xf32> to vector<8x8xf32>
    %131 = arith.mulf %129, %130 : vector<8x8xf32>
    %132 = arith.addf %126, %131 : vector<8x8xf32>
    %133 = vector.extract_strided_slice %32 {offsets = [0, 16], sizes = [8, 1], strides = [1, 1]} : vector<8x32xf32> to vector<8x1xf32>
    %134 = vector.extract_strided_slice %34 {offsets = [16, 0], sizes = [1, 8], strides = [1, 1]} : vector<32x8xf32> to vector<1x8xf32>
    %135 = vector.broadcast %133 : vector<8x1xf32> to vector<8x8xf32>
    %136 = vector.broadcast %134 : vector<1x8xf32> to vector<8x8xf32>
    %137 = arith.mulf %135, %136 : vector<8x8xf32>
    %138 = arith.addf %132, %137 : vector<8x8xf32>
    %139 = vector.extract_strided_slice %32 {offsets = [0, 17], sizes = [8, 1], strides = [1, 1]} : vector<8x32xf32> to vector<8x1xf32>
    %140 = vector.extract_strided_slice %34 {offsets = [17, 0], sizes = [1, 8], strides = [1, 1]} : vector<32x8xf32> to vector<1x8xf32>
    %141 = vector.broadcast %139 : vector<8x1xf32> to vector<8x8xf32>
    %142 = vector.broadcast %140 : vector<1x8xf32> to vector<8x8xf32>
    %143 = arith.mulf %141, %142 : vector<8x8xf32>
    %144 = arith.addf %138, %143 : vector<8x8xf32>
    %145 = vector.extract_strided_slice %32 {offsets = [0, 18], sizes = [8, 1], strides = [1, 1]} : vector<8x32xf32> to vector<8x1xf32>
    %146 = vector.extract_strided_slice %34 {offsets = [18, 0], sizes = [1, 8], strides = [1, 1]} : vector<32x8xf32> to vector<1x8xf32>
    %147 = vector.broadcast %145 : vector<8x1xf32> to vector<8x8xf32>
    %148 = vector.broadcast %146 : vector<1x8xf32> to vector<8x8xf32>
    %149 = arith.mulf %147, %148 : vector<8x8xf32>
    %150 = arith.addf %144, %149 : vector<8x8xf32>
    %151 = vector.extract_strided_slice %32 {offsets = [0, 19], sizes = [8, 1], strides = [1, 1]} : vector<8x32xf32> to vector<8x1xf32>
    %152 = vector.extract_strided_slice %34 {offsets = [19, 0], sizes = [1, 8], strides = [1, 1]} : vector<32x8xf32> to vector<1x8xf32>
    %153 = vector.broadcast %151 : vector<8x1xf32> to vector<8x8xf32>
    %154 = vector.broadcast %152 : vector<1x8xf32> to vector<8x8xf32>
    %155 = arith.mulf %153, %154 : vector<8x8xf32>
    %156 = arith.addf %150, %155 : vector<8x8xf32>
    %157 = vector.extract_strided_slice %32 {offsets = [0, 20], sizes = [8, 1], strides = [1, 1]} : vector<8x32xf32> to vector<8x1xf32>
    %158 = vector.extract_strided_slice %34 {offsets = [20, 0], sizes = [1, 8], strides = [1, 1]} : vector<32x8xf32> to vector<1x8xf32>
    %159 = vector.broadcast %157 : vector<8x1xf32> to vector<8x8xf32>
    %160 = vector.broadcast %158 : vector<1x8xf32> to vector<8x8xf32>
    %161 = arith.mulf %159, %160 : vector<8x8xf32>
    %162 = arith.addf %156, %161 : vector<8x8xf32>
    %163 = vector.extract_strided_slice %32 {offsets = [0, 21], sizes = [8, 1], strides = [1, 1]} : vector<8x32xf32> to vector<8x1xf32>
    %164 = vector.extract_strided_slice %34 {offsets = [21, 0], sizes = [1, 8], strides = [1, 1]} : vector<32x8xf32> to vector<1x8xf32>
    %165 = vector.broadcast %163 : vector<8x1xf32> to vector<8x8xf32>
    %166 = vector.broadcast %164 : vector<1x8xf32> to vector<8x8xf32>
    %167 = arith.mulf %165, %166 : vector<8x8xf32>
    %168 = arith.addf %162, %167 : vector<8x8xf32>
    %169 = vector.extract_strided_slice %32 {offsets = [0, 22], sizes = [8, 1], strides = [1, 1]} : vector<8x32xf32> to vector<8x1xf32>
    %170 = vector.extract_strided_slice %34 {offsets = [22, 0], sizes = [1, 8], strides = [1, 1]} : vector<32x8xf32> to vector<1x8xf32>
    %171 = vector.broadcast %169 : vector<8x1xf32> to vector<8x8xf32>
    %172 = vector.broadcast %170 : vector<1x8xf32> to vector<8x8xf32>
    %173 = arith.mulf %171, %172 : vector<8x8xf32>
    %174 = arith.addf %168, %173 : vector<8x8xf32>
    %175 = vector.extract_strided_slice %32 {offsets = [0, 23], sizes = [8, 1], strides = [1, 1]} : vector<8x32xf32> to vector<8x1xf32>
    %176 = vector.extract_strided_slice %34 {offsets = [23, 0], sizes = [1, 8], strides = [1, 1]} : vector<32x8xf32> to vector<1x8xf32>
    %177 = vector.broadcast %175 : vector<8x1xf32> to vector<8x8xf32>
    %178 = vector.broadcast %176 : vector<1x8xf32> to vector<8x8xf32>
    %179 = arith.mulf %177, %178 : vector<8x8xf32>
    %180 = arith.addf %174, %179 : vector<8x8xf32>
    %181 = vector.extract_strided_slice %32 {offsets = [0, 24], sizes = [8, 1], strides = [1, 1]} : vector<8x32xf32> to vector<8x1xf32>
    %182 = vector.extract_strided_slice %34 {offsets = [24, 0], sizes = [1, 8], strides = [1, 1]} : vector<32x8xf32> to vector<1x8xf32>
    %183 = vector.broadcast %181 : vector<8x1xf32> to vector<8x8xf32>
    %184 = vector.broadcast %182 : vector<1x8xf32> to vector<8x8xf32>
    %185 = arith.mulf %183, %184 : vector<8x8xf32>
    %186 = arith.addf %180, %185 : vector<8x8xf32>
    %187 = vector.extract_strided_slice %32 {offsets = [0, 25], sizes = [8, 1], strides = [1, 1]} : vector<8x32xf32> to vector<8x1xf32>
    %188 = vector.extract_strided_slice %34 {offsets = [25, 0], sizes = [1, 8], strides = [1, 1]} : vector<32x8xf32> to vector<1x8xf32>
    %189 = vector.broadcast %187 : vector<8x1xf32> to vector<8x8xf32>
    %190 = vector.broadcast %188 : vector<1x8xf32> to vector<8x8xf32>
    %191 = arith.mulf %189, %190 : vector<8x8xf32>
    %192 = arith.addf %186, %191 : vector<8x8xf32>
    %193 = vector.extract_strided_slice %32 {offsets = [0, 26], sizes = [8, 1], strides = [1, 1]} : vector<8x32xf32> to vector<8x1xf32>
    %194 = vector.extract_strided_slice %34 {offsets = [26, 0], sizes = [1, 8], strides = [1, 1]} : vector<32x8xf32> to vector<1x8xf32>
    %195 = vector.broadcast %193 : vector<8x1xf32> to vector<8x8xf32>
    %196 = vector.broadcast %194 : vector<1x8xf32> to vector<8x8xf32>
    %197 = arith.mulf %195, %196 : vector<8x8xf32>
    %198 = arith.addf %192, %197 : vector<8x8xf32>
    %199 = vector.extract_strided_slice %32 {offsets = [0, 27], sizes = [8, 1], strides = [1, 1]} : vector<8x32xf32> to vector<8x1xf32>
    %200 = vector.extract_strided_slice %34 {offsets = [27, 0], sizes = [1, 8], strides = [1, 1]} : vector<32x8xf32> to vector<1x8xf32>
    %201 = vector.broadcast %199 : vector<8x1xf32> to vector<8x8xf32>
    %202 = vector.broadcast %200 : vector<1x8xf32> to vector<8x8xf32>
    %203 = arith.mulf %201, %202 : vector<8x8xf32>
    %204 = arith.addf %198, %203 : vector<8x8xf32>
    %205 = vector.extract_strided_slice %32 {offsets = [0, 28], sizes = [8, 1], strides = [1, 1]} : vector<8x32xf32> to vector<8x1xf32>
    %206 = vector.extract_strided_slice %34 {offsets = [28, 0], sizes = [1, 8], strides = [1, 1]} : vector<32x8xf32> to vector<1x8xf32>
    %207 = vector.broadcast %205 : vector<8x1xf32> to vector<8x8xf32>
    %208 = vector.broadcast %206 : vector<1x8xf32> to vector<8x8xf32>
    %209 = arith.mulf %207, %208 : vector<8x8xf32>
    %210 = arith.addf %204, %209 : vector<8x8xf32>
    %211 = vector.extract_strided_slice %32 {offsets = [0, 29], sizes = [8, 1], strides = [1, 1]} : vector<8x32xf32> to vector<8x1xf32>
    %212 = vector.extract_strided_slice %34 {offsets = [29, 0], sizes = [1, 8], strides = [1, 1]} : vector<32x8xf32> to vector<1x8xf32>
    %213 = vector.broadcast %211 : vector<8x1xf32> to vector<8x8xf32>
    %214 = vector.broadcast %212 : vector<1x8xf32> to vector<8x8xf32>
    %215 = arith.mulf %213, %214 : vector<8x8xf32>
    %216 = arith.addf %210, %215 : vector<8x8xf32>
    %217 = vector.extract_strided_slice %32 {offsets = [0, 30], sizes = [8, 1], strides = [1, 1]} : vector<8x32xf32> to vector<8x1xf32>
    %218 = vector.extract_strided_slice %34 {offsets = [30, 0], sizes = [1, 8], strides = [1, 1]} : vector<32x8xf32> to vector<1x8xf32>
    %219 = vector.broadcast %217 : vector<8x1xf32> to vector<8x8xf32>
    %220 = vector.broadcast %218 : vector<1x8xf32> to vector<8x8xf32>
    %221 = arith.mulf %219, %220 : vector<8x8xf32>
    %222 = arith.addf %216, %221 : vector<8x8xf32>
    %223 = vector.extract_strided_slice %32 {offsets = [0, 31], sizes = [8, 1], strides = [1, 1]} : vector<8x32xf32> to vector<8x1xf32>
    %224 = vector.extract_strided_slice %34 {offsets = [31, 0], sizes = [1, 8], strides = [1, 1]} : vector<32x8xf32> to vector<1x8xf32>
    %225 = vector.broadcast %223 : vector<8x1xf32> to vector<8x8xf32>
    %226 = vector.broadcast %224 : vector<1x8xf32> to vector<8x8xf32>
    %227 = arith.mulf %225, %226 : vector<8x8xf32>
    %228 = arith.addf %222, %227 : vector<8x8xf32>
    %cst_20 = arith.constant 0.000000e+00 : f32
    %229 = vector.broadcast %cst_20 : f32 to vector<8x8xf32>
    %230 = arith.maximumf %228, %229 : vector<8x8xf32>
    %c4 = arith.constant 4 : index
    %c0_21 = arith.constant 0 : index
    %231 = vector.load %arg3[%c4, %c0_21] : memref<16x128xf32, #tpu.memory_space<vmem>>, vector<1x8xf32>
    %c5 = arith.constant 5 : index
    %c0_22 = arith.constant 0 : index
    %232 = vector.load %arg3[%c5, %c0_22] : memref<16x128xf32, #tpu.memory_space<vmem>>, vector<1x8xf32>
    %cst_23 = arith.constant dense<0.000000e+00> : vector<8xf32>
    %233 = vector.multi_reduction <add>, %230, %cst_23 [0] : vector<8x8xf32> to vector<8xf32>
    %234 = vector.shape_cast %233 : vector<8xf32> to vector<1x8xf32>
    %cst_24 = arith.constant 8.000000e+00 : f32
    %235 = vector.broadcast %cst_24 : f32 to vector<1x8xf32>
    %236 = arith.divf %234, %235 : vector<1x8xf32>
    %237 = arith.mulf %230, %230 : vector<8x8xf32>
    %cst_25 = arith.constant dense<0.000000e+00> : vector<8xf32>
    %238 = vector.multi_reduction <add>, %237, %cst_25 [0] : vector<8x8xf32> to vector<8xf32>
    %239 = vector.shape_cast %238 : vector<8xf32> to vector<1x8xf32>
    %cst_26 = arith.constant 8.000000e+00 : f32
    %240 = vector.broadcast %cst_26 : f32 to vector<1x8xf32>
    %241 = arith.divf %239, %240 : vector<1x8xf32>
    %242 = arith.mulf %236, %236 : vector<1x8xf32>
    %243 = arith.subf %241, %242 : vector<1x8xf32>
    %cst_27 = arith.constant 9.99999974E-6 : f32
    %244 = vector.broadcast %cst_27 : f32 to vector<1x8xf32>
    %245 = arith.addf %243, %244 : vector<1x8xf32>
    %246 = math.rsqrt %245 : vector<1x8xf32>
    %247 = arith.mulf %231, %246 : vector<1x8xf32>
    %248 = arith.mulf %236, %247 : vector<1x8xf32>
    %249 = arith.subf %232, %248 : vector<1x8xf32>
    %250 = vector.broadcast %247 : vector<1x8xf32> to vector<8x8xf32>
    %251 = arith.mulf %230, %250 : vector<8x8xf32>
    %252 = vector.broadcast %249 : vector<1x8xf32> to vector<8x8xf32>
    %253 = arith.addf %251, %252 : vector<8x8xf32>
    %c2_28 = arith.constant 2 : index
    %c0_29 = arith.constant 0 : index
    %c0_30 = arith.constant 0 : index
    %254 = vector.load %arg2[%c2_28, %c0_29, %c0_30] : memref<6x128x128xf32, #tpu.memory_space<vmem>>, vector<1x8x4xf32>
    %255 = vector.shape_cast %254 : vector<1x8x4xf32> to vector<8x4xf32>
    %c6 = arith.constant 6 : index
    %c0_31 = arith.constant 0 : index
    %256 = vector.load %arg3[%c6, %c0_31] : memref<16x128xf32, #tpu.memory_space<vmem>>, vector<1x4xf32>
    %257 = vector.extract_strided_slice %253 {offsets = [0, 0], sizes = [8, 1], strides = [1, 1]} : vector<8x8xf32> to vector<8x1xf32>
    %258 = vector.extract_strided_slice %255 {offsets = [0, 0], sizes = [1, 4], strides = [1, 1]} : vector<8x4xf32> to vector<1x4xf32>
    %259 = vector.broadcast %257 : vector<8x1xf32> to vector<8x4xf32>
    %260 = vector.broadcast %258 : vector<1x4xf32> to vector<8x4xf32>
    %261 = arith.mulf %259, %260 : vector<8x4xf32>
    %262 = vector.broadcast %256 : vector<1x4xf32> to vector<8x4xf32>
    %263 = arith.addf %261, %262 : vector<8x4xf32>
    %264 = vector.extract_strided_slice %253 {offsets = [0, 1], sizes = [8, 1], strides = [1, 1]} : vector<8x8xf32> to vector<8x1xf32>
    %265 = vector.extract_strided_slice %255 {offsets = [1, 0], sizes = [1, 4], strides = [1, 1]} : vector<8x4xf32> to vector<1x4xf32>
    %266 = vector.broadcast %264 : vector<8x1xf32> to vector<8x4xf32>
    %267 = vector.broadcast %265 : vector<1x4xf32> to vector<8x4xf32>
    %268 = arith.mulf %266, %267 : vector<8x4xf32>
    %269 = arith.addf %263, %268 : vector<8x4xf32>
    %270 = vector.extract_strided_slice %253 {offsets = [0, 2], sizes = [8, 1], strides = [1, 1]} : vector<8x8xf32> to vector<8x1xf32>
    %271 = vector.extract_strided_slice %255 {offsets = [2, 0], sizes = [1, 4], strides = [1, 1]} : vector<8x4xf32> to vector<1x4xf32>
    %272 = vector.broadcast %270 : vector<8x1xf32> to vector<8x4xf32>
    %273 = vector.broadcast %271 : vector<1x4xf32> to vector<8x4xf32>
    %274 = arith.mulf %272, %273 : vector<8x4xf32>
    %275 = arith.addf %269, %274 : vector<8x4xf32>
    %276 = vector.extract_strided_slice %253 {offsets = [0, 3], sizes = [8, 1], strides = [1, 1]} : vector<8x8xf32> to vector<8x1xf32>
    %277 = vector.extract_strided_slice %255 {offsets = [3, 0], sizes = [1, 4], strides = [1, 1]} : vector<8x4xf32> to vector<1x4xf32>
    %278 = vector.broadcast %276 : vector<8x1xf32> to vector<8x4xf32>
    %279 = vector.broadcast %277 : vector<1x4xf32> to vector<8x4xf32>
    %280 = arith.mulf %278, %279 : vector<8x4xf32>
    %281 = arith.addf %275, %280 : vector<8x4xf32>
    %282 = vector.extract_strided_slice %253 {offsets = [0, 4], sizes = [8, 1], strides = [1, 1]} : vector<8x8xf32> to vector<8x1xf32>
    %283 = vector.extract_strided_slice %255 {offsets = [4, 0], sizes = [1, 4], strides = [1, 1]} : vector<8x4xf32> to vector<1x4xf32>
    %284 = vector.broadcast %282 : vector<8x1xf32> to vector<8x4xf32>
    %285 = vector.broadcast %283 : vector<1x4xf32> to vector<8x4xf32>
    %286 = arith.mulf %284, %285 : vector<8x4xf32>
    %287 = arith.addf %281, %286 : vector<8x4xf32>
    %288 = vector.extract_strided_slice %253 {offsets = [0, 5], sizes = [8, 1], strides = [1, 1]} : vector<8x8xf32> to vector<8x1xf32>
    %289 = vector.extract_strided_slice %255 {offsets = [5, 0], sizes = [1, 4], strides = [1, 1]} : vector<8x4xf32> to vector<1x4xf32>
    %290 = vector.broadcast %288 : vector<8x1xf32> to vector<8x4xf32>
    %291 = vector.broadcast %289 : vector<1x4xf32> to vector<8x4xf32>
    %292 = arith.mulf %290, %291 : vector<8x4xf32>
    %293 = arith.addf %287, %292 : vector<8x4xf32>
    %294 = vector.extract_strided_slice %253 {offsets = [0, 6], sizes = [8, 1], strides = [1, 1]} : vector<8x8xf32> to vector<8x1xf32>
    %295 = vector.extract_strided_slice %255 {offsets = [6, 0], sizes = [1, 4], strides = [1, 1]} : vector<8x4xf32> to vector<1x4xf32>
    %296 = vector.broadcast %294 : vector<8x1xf32> to vector<8x4xf32>
    %297 = vector.broadcast %295 : vector<1x4xf32> to vector<8x4xf32>
    %298 = arith.mulf %296, %297 : vector<8x4xf32>
    %299 = arith.addf %293, %298 : vector<8x4xf32>
    %300 = vector.extract_strided_slice %253 {offsets = [0, 7], sizes = [8, 1], strides = [1, 1]} : vector<8x8xf32> to vector<8x1xf32>
    %301 = vector.extract_strided_slice %255 {offsets = [7, 0], sizes = [1, 4], strides = [1, 1]} : vector<8x4xf32> to vector<1x4xf32>
    %302 = vector.broadcast %300 : vector<8x1xf32> to vector<8x4xf32>
    %303 = vector.broadcast %301 : vector<1x4xf32> to vector<8x4xf32>
    %304 = arith.mulf %302, %303 : vector<8x4xf32>
    %305 = arith.addf %299, %304 : vector<8x4xf32>
    %c7 = arith.constant 7 : index
    %c0_32 = arith.constant 0 : index
    %306 = vector.load %arg3[%c7, %c0_32] : memref<16x128xf32, #tpu.memory_space<vmem>>, vector<1x4xf32>
    %c8 = arith.constant 8 : index
    %c0_33 = arith.constant 0 : index
    %307 = vector.load %arg3[%c8, %c0_33] : memref<16x128xf32, #tpu.memory_space<vmem>>, vector<1x4xf32>
    %cst_34 = arith.constant dense<0.000000e+00> : vector<4xf32>
    %308 = vector.multi_reduction <add>, %305, %cst_34 [0] : vector<8x4xf32> to vector<4xf32>
    %309 = vector.shape_cast %308 : vector<4xf32> to vector<1x4xf32>
    %cst_35 = arith.constant 8.000000e+00 : f32
    %310 = vector.broadcast %cst_35 : f32 to vector<1x4xf32>
    %311 = arith.divf %309, %310 : vector<1x4xf32>
    %312 = arith.mulf %305, %305 : vector<8x4xf32>
    %cst_36 = arith.constant dense<0.000000e+00> : vector<4xf32>
    %313 = vector.multi_reduction <add>, %312, %cst_36 [0] : vector<8x4xf32> to vector<4xf32>
    %314 = vector.shape_cast %313 : vector<4xf32> to vector<1x4xf32>
    %cst_37 = arith.constant 8.000000e+00 : f32
    %315 = vector.broadcast %cst_37 : f32 to vector<1x4xf32>
    %316 = arith.divf %314, %315 : vector<1x4xf32>
    %317 = arith.mulf %311, %311 : vector<1x4xf32>
    %318 = arith.subf %316, %317 : vector<1x4xf32>
    %cst_38 = arith.constant 9.99999974E-6 : f32
    %319 = vector.broadcast %cst_38 : f32 to vector<1x4xf32>
    %320 = arith.addf %318, %319 : vector<1x4xf32>
    %321 = math.rsqrt %320 : vector<1x4xf32>
    %322 = arith.mulf %306, %321 : vector<1x4xf32>
    %323 = arith.mulf %311, %322 : vector<1x4xf32>
    %324 = arith.subf %307, %323 : vector<1x4xf32>
    %325 = vector.broadcast %322 : vector<1x4xf32> to vector<8x4xf32>
    %326 = arith.mulf %305, %325 : vector<8x4xf32>
    %327 = vector.broadcast %324 : vector<1x4xf32> to vector<8x4xf32>
    %328 = arith.addf %326, %327 : vector<8x4xf32>
    %329 = vector.extract_strided_slice %328 {offsets = [0, 0], sizes = [8, 2], strides = [1, 1]} : vector<8x4xf32> to vector<8x2xf32>
    %330 = vector.extract_strided_slice %328 {offsets = [0, 2], sizes = [8, 2], strides = [1, 1]} : vector<8x4xf32> to vector<8x2xf32>
    %cst_39 = arith.constant 5.000000e-01 : f32
    %331 = vector.broadcast %cst_39 : f32 to vector<8x2xf32>
    %332 = arith.mulf %331, %330 : vector<8x2xf32>
    %333 = math.exp %332 : vector<8x2xf32>
    %334 = arith.mulf %1, %333 : vector<8x2xf32>
    %335 = arith.addf %334, %329 : vector<8x2xf32>
    %c3_40 = arith.constant 3 : index
    %c0_41 = arith.constant 0 : index
    %c0_42 = arith.constant 0 : index
    %336 = vector.load %arg2[%c3_40, %c0_41, %c0_42] : memref<6x128x128xf32, #tpu.memory_space<vmem>>, vector<1x2x8xf32>
    %337 = vector.shape_cast %336 : vector<1x2x8xf32> to vector<2x8xf32>
    %c9 = arith.constant 9 : index
    %c0_43 = arith.constant 0 : index
    %338 = vector.load %arg3[%c9, %c0_43] : memref<16x128xf32, #tpu.memory_space<vmem>>, vector<1x8xf32>
    %339 = vector.extract_strided_slice %335 {offsets = [0, 0], sizes = [8, 1], strides = [1, 1]} : vector<8x2xf32> to vector<8x1xf32>
    %340 = vector.extract_strided_slice %337 {offsets = [0, 0], sizes = [1, 8], strides = [1, 1]} : vector<2x8xf32> to vector<1x8xf32>
    %341 = vector.broadcast %339 : vector<8x1xf32> to vector<8x8xf32>
    %342 = vector.broadcast %340 : vector<1x8xf32> to vector<8x8xf32>
    %343 = arith.mulf %341, %342 : vector<8x8xf32>
    %344 = vector.broadcast %338 : vector<1x8xf32> to vector<8x8xf32>
    %345 = arith.addf %343, %344 : vector<8x8xf32>
    %346 = vector.extract_strided_slice %335 {offsets = [0, 1], sizes = [8, 1], strides = [1, 1]} : vector<8x2xf32> to vector<8x1xf32>
    %347 = vector.extract_strided_slice %337 {offsets = [1, 0], sizes = [1, 8], strides = [1, 1]} : vector<2x8xf32> to vector<1x8xf32>
    %348 = vector.broadcast %346 : vector<8x1xf32> to vector<8x8xf32>
    %349 = vector.broadcast %347 : vector<1x8xf32> to vector<8x8xf32>
    %350 = arith.mulf %348, %349 : vector<8x8xf32>
    %351 = arith.addf %345, %350 : vector<8x8xf32>
    %cst_44 = arith.constant 0.000000e+00 : f32
    %352 = vector.broadcast %cst_44 : f32 to vector<8x8xf32>
    %353 = arith.maximumf %351, %352 : vector<8x8xf32>
    %c10 = arith.constant 10 : index
    %c0_45 = arith.constant 0 : index
    %354 = vector.load %arg3[%c10, %c0_45] : memref<16x128xf32, #tpu.memory_space<vmem>>, vector<1x8xf32>
    %c11 = arith.constant 11 : index
    %c0_46 = arith.constant 0 : index
    %355 = vector.load %arg3[%c11, %c0_46] : memref<16x128xf32, #tpu.memory_space<vmem>>, vector<1x8xf32>
    %cst_47 = arith.constant dense<0.000000e+00> : vector<8xf32>
    %356 = vector.multi_reduction <add>, %353, %cst_47 [0] : vector<8x8xf32> to vector<8xf32>
    %357 = vector.shape_cast %356 : vector<8xf32> to vector<1x8xf32>
    %cst_48 = arith.constant 8.000000e+00 : f32
    %358 = vector.broadcast %cst_48 : f32 to vector<1x8xf32>
    %359 = arith.divf %357, %358 : vector<1x8xf32>
    %360 = arith.mulf %353, %353 : vector<8x8xf32>
    %cst_49 = arith.constant dense<0.000000e+00> : vector<8xf32>
    %361 = vector.multi_reduction <add>, %360, %cst_49 [0] : vector<8x8xf32> to vector<8xf32>
    %362 = vector.shape_cast %361 : vector<8xf32> to vector<1x8xf32>
    %cst_50 = arith.constant 8.000000e+00 : f32
    %363 = vector.broadcast %cst_50 : f32 to vector<1x8xf32>
    %364 = arith.divf %362, %363 : vector<1x8xf32>
    %365 = arith.mulf %359, %359 : vector<1x8xf32>
    %366 = arith.subf %364, %365 : vector<1x8xf32>
    %cst_51 = arith.constant 9.99999974E-6 : f32
    %367 = vector.broadcast %cst_51 : f32 to vector<1x8xf32>
    %368 = arith.addf %366, %367 : vector<1x8xf32>
    %369 = math.rsqrt %368 : vector<1x8xf32>
    %370 = arith.mulf %354, %369 : vector<1x8xf32>
    %371 = arith.mulf %359, %370 : vector<1x8xf32>
    %372 = arith.subf %355, %371 : vector<1x8xf32>
    %373 = vector.broadcast %370 : vector<1x8xf32> to vector<8x8xf32>
    %374 = arith.mulf %353, %373 : vector<8x8xf32>
    %375 = vector.broadcast %372 : vector<1x8xf32> to vector<8x8xf32>
    %376 = arith.addf %374, %375 : vector<8x8xf32>
    %c4_52 = arith.constant 4 : index
    %c0_53 = arith.constant 0 : index
    %c0_54 = arith.constant 0 : index
    %377 = vector.load %arg2[%c4_52, %c0_53, %c0_54] : memref<6x128x128xf32, #tpu.memory_space<vmem>>, vector<1x8x32xf32>
    %378 = vector.shape_cast %377 : vector<1x8x32xf32> to vector<8x32xf32>
    %c12 = arith.constant 12 : index
    %c0_55 = arith.constant 0 : index
    %379 = vector.load %arg3[%c12, %c0_55] : memref<16x128xf32, #tpu.memory_space<vmem>>, vector<1x32xf32>
    %380 = vector.extract_strided_slice %376 {offsets = [0, 0], sizes = [8, 1], strides = [1, 1]} : vector<8x8xf32> to vector<8x1xf32>
    %381 = vector.extract_strided_slice %378 {offsets = [0, 0], sizes = [1, 32], strides = [1, 1]} : vector<8x32xf32> to vector<1x32xf32>
    %382 = vector.broadcast %380 : vector<8x1xf32> to vector<8x32xf32>
    %383 = vector.broadcast %381 : vector<1x32xf32> to vector<8x32xf32>
    %384 = arith.mulf %382, %383 : vector<8x32xf32>
    %385 = vector.broadcast %379 : vector<1x32xf32> to vector<8x32xf32>
    %386 = arith.addf %384, %385 : vector<8x32xf32>
    %387 = vector.extract_strided_slice %376 {offsets = [0, 1], sizes = [8, 1], strides = [1, 1]} : vector<8x8xf32> to vector<8x1xf32>
    %388 = vector.extract_strided_slice %378 {offsets = [1, 0], sizes = [1, 32], strides = [1, 1]} : vector<8x32xf32> to vector<1x32xf32>
    %389 = vector.broadcast %387 : vector<8x1xf32> to vector<8x32xf32>
    %390 = vector.broadcast %388 : vector<1x32xf32> to vector<8x32xf32>
    %391 = arith.mulf %389, %390 : vector<8x32xf32>
    %392 = arith.addf %386, %391 : vector<8x32xf32>
    %393 = vector.extract_strided_slice %376 {offsets = [0, 2], sizes = [8, 1], strides = [1, 1]} : vector<8x8xf32> to vector<8x1xf32>
    %394 = vector.extract_strided_slice %378 {offsets = [2, 0], sizes = [1, 32], strides = [1, 1]} : vector<8x32xf32> to vector<1x32xf32>
    %395 = vector.broadcast %393 : vector<8x1xf32> to vector<8x32xf32>
    %396 = vector.broadcast %394 : vector<1x32xf32> to vector<8x32xf32>
    %397 = arith.mulf %395, %396 : vector<8x32xf32>
    %398 = arith.addf %392, %397 : vector<8x32xf32>
    %399 = vector.extract_strided_slice %376 {offsets = [0, 3], sizes = [8, 1], strides = [1, 1]} : vector<8x8xf32> to vector<8x1xf32>
    %400 = vector.extract_strided_slice %378 {offsets = [3, 0], sizes = [1, 32], strides = [1, 1]} : vector<8x32xf32> to vector<1x32xf32>
    %401 = vector.broadcast %399 : vector<8x1xf32> to vector<8x32xf32>
    %402 = vector.broadcast %400 : vector<1x32xf32> to vector<8x32xf32>
    %403 = arith.mulf %401, %402 : vector<8x32xf32>
    %404 = arith.addf %398, %403 : vector<8x32xf32>
    %405 = vector.extract_strided_slice %376 {offsets = [0, 4], sizes = [8, 1], strides = [1, 1]} : vector<8x8xf32> to vector<8x1xf32>
    %406 = vector.extract_strided_slice %378 {offsets = [4, 0], sizes = [1, 32], strides = [1, 1]} : vector<8x32xf32> to vector<1x32xf32>
    %407 = vector.broadcast %405 : vector<8x1xf32> to vector<8x32xf32>
    %408 = vector.broadcast %406 : vector<1x32xf32> to vector<8x32xf32>
    %409 = arith.mulf %407, %408 : vector<8x32xf32>
    %410 = arith.addf %404, %409 : vector<8x32xf32>
    %411 = vector.extract_strided_slice %376 {offsets = [0, 5], sizes = [8, 1], strides = [1, 1]} : vector<8x8xf32> to vector<8x1xf32>
    %412 = vector.extract_strided_slice %378 {offsets = [5, 0], sizes = [1, 32], strides = [1, 1]} : vector<8x32xf32> to vector<1x32xf32>
    %413 = vector.broadcast %411 : vector<8x1xf32> to vector<8x32xf32>
    %414 = vector.broadcast %412 : vector<1x32xf32> to vector<8x32xf32>
    %415 = arith.mulf %413, %414 : vector<8x32xf32>
    %416 = arith.addf %410, %415 : vector<8x32xf32>
    %417 = vector.extract_strided_slice %376 {offsets = [0, 6], sizes = [8, 1], strides = [1, 1]} : vector<8x8xf32> to vector<8x1xf32>
    %418 = vector.extract_strided_slice %378 {offsets = [6, 0], sizes = [1, 32], strides = [1, 1]} : vector<8x32xf32> to vector<1x32xf32>
    %419 = vector.broadcast %417 : vector<8x1xf32> to vector<8x32xf32>
    %420 = vector.broadcast %418 : vector<1x32xf32> to vector<8x32xf32>
    %421 = arith.mulf %419, %420 : vector<8x32xf32>
    %422 = arith.addf %416, %421 : vector<8x32xf32>
    %423 = vector.extract_strided_slice %376 {offsets = [0, 7], sizes = [8, 1], strides = [1, 1]} : vector<8x8xf32> to vector<8x1xf32>
    %424 = vector.extract_strided_slice %378 {offsets = [7, 0], sizes = [1, 32], strides = [1, 1]} : vector<8x32xf32> to vector<1x32xf32>
    %425 = vector.broadcast %423 : vector<8x1xf32> to vector<8x32xf32>
    %426 = vector.broadcast %424 : vector<1x32xf32> to vector<8x32xf32>
    %427 = arith.mulf %425, %426 : vector<8x32xf32>
    %428 = arith.addf %422, %427 : vector<8x32xf32>
    %cst_56 = arith.constant 0.000000e+00 : f32
    %429 = vector.broadcast %cst_56 : f32 to vector<8x32xf32>
    %430 = arith.maximumf %428, %429 : vector<8x32xf32>
    %c13 = arith.constant 13 : index
    %c0_57 = arith.constant 0 : index
    %431 = vector.load %arg3[%c13, %c0_57] : memref<16x128xf32, #tpu.memory_space<vmem>>, vector<1x32xf32>
    %c14 = arith.constant 14 : index
    %c0_58 = arith.constant 0 : index
    %432 = vector.load %arg3[%c14, %c0_58] : memref<16x128xf32, #tpu.memory_space<vmem>>, vector<1x32xf32>
    %cst_59 = arith.constant dense<0.000000e+00> : vector<32xf32>
    %433 = vector.multi_reduction <add>, %430, %cst_59 [0] : vector<8x32xf32> to vector<32xf32>
    %434 = vector.shape_cast %433 : vector<32xf32> to vector<1x32xf32>
    %cst_60 = arith.constant 8.000000e+00 : f32
    %435 = vector.broadcast %cst_60 : f32 to vector<1x32xf32>
    %436 = arith.divf %434, %435 : vector<1x32xf32>
    %437 = arith.mulf %430, %430 : vector<8x32xf32>
    %cst_61 = arith.constant dense<0.000000e+00> : vector<32xf32>
    %438 = vector.multi_reduction <add>, %437, %cst_61 [0] : vector<8x32xf32> to vector<32xf32>
    %439 = vector.shape_cast %438 : vector<32xf32> to vector<1x32xf32>
    %cst_62 = arith.constant 8.000000e+00 : f32
    %440 = vector.broadcast %cst_62 : f32 to vector<1x32xf32>
    %441 = arith.divf %439, %440 : vector<1x32xf32>
    %442 = arith.mulf %436, %436 : vector<1x32xf32>
    %443 = arith.subf %441, %442 : vector<1x32xf32>
    %cst_63 = arith.constant 9.99999974E-6 : f32
    %444 = vector.broadcast %cst_63 : f32 to vector<1x32xf32>
    %445 = arith.addf %443, %444 : vector<1x32xf32>
    %446 = math.rsqrt %445 : vector<1x32xf32>
    %447 = arith.mulf %431, %446 : vector<1x32xf32>
    %448 = arith.mulf %436, %447 : vector<1x32xf32>
    %449 = arith.subf %432, %448 : vector<1x32xf32>
    %450 = vector.broadcast %447 : vector<1x32xf32> to vector<8x32xf32>
    %451 = arith.mulf %430, %450 : vector<8x32xf32>
    %452 = vector.broadcast %449 : vector<1x32xf32> to vector<8x32xf32>
    %453 = arith.addf %451, %452 : vector<8x32xf32>
    %c5_64 = arith.constant 5 : index
    %c0_65 = arith.constant 0 : index
    %c0_66 = arith.constant 0 : index
    %454 = vector.load %arg2[%c5_64, %c0_65, %c0_66] : memref<6x128x128xf32, #tpu.memory_space<vmem>>, vector<1x32x128xf32>
    %455 = vector.shape_cast %454 : vector<1x32x128xf32> to vector<32x128xf32>
    %cst_67 = arith.constant dense<0.000000e+00> : vector<8x128xf32>
    %456 = tpu.matmul %453, %455, %cst_67 {dimension_numbers = #tpu.dot_dimension_numbers<[1], [0], [0], [1], [0, 0, 1, 1], [], []>} : vector<8x32xf32>, vector<32x128xf32>, vector<8x128xf32> -> vector<8x128xf32>
    %c15 = arith.constant 15 : index
    %c0_68 = arith.constant 0 : index
    %457 = vector.load %arg3[%c15, %c0_68] : memref<16x128xf32, #tpu.memory_space<vmem>>, vector<1x128xf32>
    %458 = vector.broadcast %457 : vector<1x128xf32> to vector<8x128xf32>
    %459 = arith.addf %456, %458 : vector<8x128xf32>
    %cst_69 = arith.constant 0.000000e+00 : f32
    %460 = vector.broadcast %cst_69 : f32 to vector<8x128xf32>
    %461 = arith.subf %460, %459 : vector<8x128xf32>
    %462 = math.exp %461 : vector<8x128xf32>
    %cst_70 = arith.constant 1.000000e+00 : f32
    %463 = vector.broadcast %cst_70 : f32 to vector<8x128xf32>
    %464 = arith.addf %463, %462 : vector<8x128xf32>
    %465 = tpu.reciprocal %464 {approx = true} : vector<8x128xf32> -> vector<8x128xf32>
    %c0_71 = arith.constant 0 : index
    %c0_72 = arith.constant 0 : index
    %466 = vector.load %arg4[%c0_71, %c0_72] : memref<8x128xf32, #tpu.memory_space<vmem>>, vector<8x128xf32>
    tpu.vector_store %arg4[%c0_71, %c0_72], %465 {strides = array<i32>} : memref<8x128xf32, #tpu.memory_space<vmem>>, vector<8x128xf32>,
    %467 = tpu.iota {dimensions = array<i32: 1>} : vector<8x128xi32>
    %cst_73 = arith.constant 0.000000e+00 : f32
    %468 = vector.broadcast %cst_73 : f32 to vector<8x128xf32>
    %c0_i32 = arith.constant 0 : i32
    %469 = vector.broadcast %c0_i32 : i32 to vector<8x128xi32>
    %470 = arith.cmpi eq, %467, %469 : vector<8x128xi32>
    %471 = vector.extract_strided_slice %335 {offsets = [0, 0], sizes = [8, 1], strides = [1, 1]} : vector<8x2xf32> to vector<8x1xf32>
    %cst_74 = arith.constant 0.000000e+00 : f32
    %472 = vector.shape_cast %471 : vector<8x1xf32> to vector<8x1xf32>
    %473 = vector.broadcast %472 : vector<8x1xf32> to vector<8x128xf32>
    %474 = vector.broadcast %cst_74 : f32 to vector<8x128xf32>
    %475 = arith.select %470, %473, %474 : vector<8x128xi1>, vector<8x128xf32>
    %476 = arith.addf %468, %475 : vector<8x128xf32>
    %c2_i32 = arith.constant 2 : i32
    %477 = vector.broadcast %c2_i32 : i32 to vector<8x128xi32>
    %478 = arith.cmpi eq, %467, %477 : vector<8x128xi32>
    %479 = vector.extract_strided_slice %328 {offsets = [0, 0], sizes = [8, 1], strides = [1, 1]} : vector<8x4xf32> to vector<8x1xf32>
    %cst_75 = arith.constant 0.000000e+00 : f32
    %480 = vector.shape_cast %479 : vector<8x1xf32> to vector<8x1xf32>
    %481 = vector.broadcast %480 : vector<8x1xf32> to vector<8x128xf32>
    %482 = vector.broadcast %cst_75 : f32 to vector<8x128xf32>
    %483 = arith.select %478, %481, %482 : vector<8x128xi1>, vector<8x128xf32>
    %484 = arith.addf %476, %483 : vector<8x128xf32>
    %c4_i32 = arith.constant 4 : i32
    %485 = vector.broadcast %c4_i32 : i32 to vector<8x128xi32>
    %486 = arith.cmpi eq, %467, %485 : vector<8x128xi32>
    %487 = vector.extract_strided_slice %328 {offsets = [0, 2], sizes = [8, 1], strides = [1, 1]} : vector<8x4xf32> to vector<8x1xf32>
    %cst_76 = arith.constant 0.000000e+00 : f32
    %488 = vector.shape_cast %487 : vector<8x1xf32> to vector<8x1xf32>
    %489 = vector.broadcast %488 : vector<8x1xf32> to vector<8x128xf32>
    %490 = vector.broadcast %cst_76 : f32 to vector<8x128xf32>
    %491 = arith.select %486, %489, %490 : vector<8x128xi1>, vector<8x128xf32>
    %492 = arith.addf %484, %491 : vector<8x128xf32>
    %c1_i32 = arith.constant 1 : i32
    %493 = vector.broadcast %c1_i32 : i32 to vector<8x128xi32>
    %494 = arith.cmpi eq, %467, %493 : vector<8x128xi32>
    %495 = vector.extract_strided_slice %335 {offsets = [0, 1], sizes = [8, 1], strides = [1, 1]} : vector<8x2xf32> to vector<8x1xf32>
    %cst_77 = arith.constant 0.000000e+00 : f32
    %496 = vector.shape_cast %495 : vector<8x1xf32> to vector<8x1xf32>
    %497 = vector.broadcast %496 : vector<8x1xf32> to vector<8x128xf32>
    %498 = vector.broadcast %cst_77 : f32 to vector<8x128xf32>
    %499 = arith.select %494, %497, %498 : vector<8x128xi1>, vector<8x128xf32>
    %500 = arith.addf %492, %499 : vector<8x128xf32>
    %c3_i32 = arith.constant 3 : i32
    %501 = vector.broadcast %c3_i32 : i32 to vector<8x128xi32>
    %502 = arith.cmpi eq, %467, %501 : vector<8x128xi32>
    %503 = vector.extract_strided_slice %328 {offsets = [0, 1], sizes = [8, 1], strides = [1, 1]} : vector<8x4xf32> to vector<8x1xf32>
    %cst_78 = arith.constant 0.000000e+00 : f32
    %504 = vector.shape_cast %503 : vector<8x1xf32> to vector<8x1xf32>
    %505 = vector.broadcast %504 : vector<8x1xf32> to vector<8x128xf32>
    %506 = vector.broadcast %cst_78 : f32 to vector<8x128xf32>
    %507 = arith.select %502, %505, %506 : vector<8x128xi1>, vector<8x128xf32>
    %508 = arith.addf %500, %507 : vector<8x128xf32>
    %c5_i32 = arith.constant 5 : i32
    %509 = vector.broadcast %c5_i32 : i32 to vector<8x128xi32>
    %510 = arith.cmpi eq, %467, %509 : vector<8x128xi32>
    %511 = vector.extract_strided_slice %328 {offsets = [0, 3], sizes = [8, 1], strides = [1, 1]} : vector<8x4xf32> to vector<8x1xf32>
    %cst_79 = arith.constant 0.000000e+00 : f32
    %512 = vector.shape_cast %511 : vector<8x1xf32> to vector<8x1xf32>
    %513 = vector.broadcast %512 : vector<8x1xf32> to vector<8x128xf32>
    %514 = vector.broadcast %cst_79 : f32 to vector<8x128xf32>
    %515 = arith.select %510, %513, %514 : vector<8x128xi1>, vector<8x128xf32>
    %516 = arith.addf %508, %515 : vector<8x128xf32>
    %c0_80 = arith.constant 0 : index
    %c0_81 = arith.constant 0 : index
    %517 = vector.load %arg5[%c0_80, %c0_81] : memref<8x128xf32, #tpu.memory_space<vmem>>, vector<8x128xf32>
    tpu.vector_store %arg5[%c0_80, %c0_81], %516 {strides = array<i32>} : memref<8x128xf32, #tpu.memory_space<vmem>>, vector<8x128xf32>,
    return
  }
}

</mosaic_0001>

<llo_original>
// kernel: vae_forward.1
$region0: #{vae_forward.1}
  #allocation0 [shape = 'u32[]', space=smem, size = 0x4, offset = 0x4, fixed_abs, tag = 'smem constant byte address 0x4 - core index']
  #allocation1 [shape = 'u32[144,128]{1,0:T(1,128)}', space=vmem, size = 0x12000, scoped, tag = 'internal scratch']
  %s0 = inlined_call_operand.hbm [shape: f32[8,128], index: 0, kind: input, shape index: {}]
  %s1 = inlined_call_operand.vmem [shape: f32[8,2], index: 1, kind: input, shape index: {}]
  %s2 = inlined_call_operand.hbm [shape: f32[6,128,128], index: 2, kind: input, shape index: {}]
  %s3 = inlined_call_operand.vmem [shape: f32[16,128], index: 3, kind: input, shape index: {}]
  %s4 = inlined_call_operand.hbm [shape: f32[8,128], index: 4, kind: output, shape index: {0}]
  %s5 = inlined_call_operand.vmem [shape: f32[8,128], index: 5, kind: output, shape index: {1}]
  %6 = xla_tuple %s4, %s5
  %s7 = sld [smem:[#allocation0]]
  $region42: #{vae_forward.1} parent=0
    _
  %s9 = ssub.s32 1, %s7
  %s10 = scalar_select 0, %s9, %s7
  $region1: #{vae_forward.1} parent=0
    #allocation2 [shape = 'u8[4096]{0}', space=vmem, size = 0x1000, scoped, tag = 'input window, operand 0, single buffered']
    #allocation3 [shape = 's32[1]{0}', space=sflag, size = 0x4, scoped, tag = 'scoped memory for vae_forward.1']
    #allocation4 [shape = 's32[1]{0}', space=sflag, size = 0x4, scoped, tag = 'scoped memory for vae_forward.1']
    #allocation5 [shape = 'u8[393216]{0}', space=vmem, size = 0x60000, scoped, tag = 'input window, operand 2, single buffered']
    #allocation6 [shape = 's32[1]{0}', space=sflag, size = 0x4, scoped, tag = 'scoped memory for vae_forward.1']
    #allocation7 [shape = 'u8[4096]{0}', space=vmem, size = 0x1000, scoped, tag = 'output window, operand 0, single buffered']
    %11 = vsyncpa [#allocation3], 0
    %12 = vsyncpa [#allocation6], 0
    %13 = vsyncpa [#allocation4], 0
    // Predicated region
    $region2: #{vae_forward.1} parent=1 // pred_check
      _
    $region3: #{vae_forward.1} parent=1 // pred_check_branch
      %15 = sbr.rel (0) target = $region5
    $region4: #{vae_forward.1} parent=1 // pred_region
      %s17 = ssub.s32 128, 128
      %18 = vsyncadd [#allocation3], %s17
      %s20 = sshll.u32 [#allocation2], 4
      %s21 = int_to_ptr.vmem [resolvable:$true] %s20
      %23 = dma.hbm_to_vmem [thread:$0]  %s0, 128, %s21, [#allocation3]
    $region5: #{vae_forward.1} parent=1 // pred_fallthru
      _
    // Predicated region
    $region6: #{vae_forward.1} parent=1 // pred_check
      _
    $region7: #{vae_forward.1} parent=1 // pred_check_branch
      %25 = sbr.rel (0) target = $region9
    $region8: #{vae_forward.1} parent=1 // pred_region
      _
    $region9: #{vae_forward.1} parent=1 // pred_fallthru
      _
    // Predicated region
    $region10: #{vae_forward.1} parent=1 // pred_check
      _
    $region11: #{vae_forward.1} parent=1 // pred_check_branch
      %27 = sbr.rel (0) target = $region13
    $region12: #{vae_forward.1} parent=1 // pred_region
      %s29 = ssub.s32 12288, 12288
      %30 = vsyncadd [#allocation6], %s29
      %s31 = sshll.u32 [#allocation5], 4
      %s32 = int_to_ptr.vmem [resolvable:$true] %s31
      %37 = dma.hbm_to_vmem [thread:$0]  %s2, 12288, %s32, [#allocation6], 128, 128, 8
    $region13: #{vae_forward.1} parent=1 // pred_fallthru
      _
    // Predicated region
    $region14: #{vae_forward.1} parent=1 // pred_check
      _
    $region15: #{vae_forward.1} parent=1 // pred_check_branch
      %39 = sbr.rel (0) target = $region17
    $region16: #{vae_forward.1} parent=1 // pred_region
      _
    $region17: #{vae_forward.1} parent=1 // pred_fallthru
      _
    // Predicated region
    $region18: #{vae_forward.1} parent=1 // pred_check
      _
    $region19: #{vae_forward.1} parent=1 // pred_check_branch
      %41 = sbr.rel (0) target = $region21
    $region20: #{vae_forward.1} parent=1 // pred_region
      %42 = dma.done [#allocation3], 128
    $region21: #{vae_forward.1} parent=1 // pred_fallthru
      _
    // Predicated region
    $region22: #{vae_forward.1} parent=1 // pred_check
      _
    $region23: #{vae_forward.1} parent=1 // pred_check_branch
      %44 = sbr.rel (0) target = $region25
    $region24: #{vae_forward.1} parent=1 // pred_region
      %45 = dma.done [#allocation6], 12288
    $region25: #{vae_forward.1} parent=1 // pred_fallthru
      _
    %v46 = vld [vmem:[#allocation2] sm:$0xff]
    %v47 = vld [vmem:[%s1] sm:$0xff]
    %v48 = vld [vmem:[#allocation5] sm:$0xff]
    %v49 = vld [vmem:[#allocation5 + $0x8] sm:$0xff]
    %v50 = vld [vmem:[#allocation5 + $0x10] sm:$0xff]
    %v51 = vld [vmem:[#allocation5 + $0x18] sm:$0xff]
    %v52 = vld [vmem:[#allocation5 + $0x20] sm:$0xff]
    %v53 = vld [vmem:[#allocation5 + $0x28] sm:$0xff]
    %v54 = vld [vmem:[#allocation5 + $0x30] sm:$0xff]
    %v55 = vld [vmem:[#allocation5 + $0x38] sm:$0xff]
    %v56 = vld [vmem:[#allocation5 + $0x40] sm:$0xff]
    %v57 = vld [vmem:[#allocation5 + $0x48] sm:$0xff]
    %v58 = vld [vmem:[#allocation5 + $0x50] sm:$0xff]
    %v59 = vld [vmem:[#allocation5 + $0x58] sm:$0xff]
    %v60 = vld [vmem:[#allocation5 + $0x60] sm:$0xff]
    %v61 = vld [vmem:[#allocation5 + $0x68] sm:$0xff]
    %v62 = vld [vmem:[#allocation5 + $0x70] sm:$0xff]
    %v63 = vld [vmem:[#allocation5 + $0x78] sm:$0xff]
    %v64 = vld [vmem:[%s3] sm:$0x1]
    %v65 = vlaneseq
    %v66 = vshrl.u32 %v65, 7
    %v67 = vsub.s32 0, %v66
    %v68 = vrot.slane %v64, %v67
    %69 = vmatprep.subr.mxu0 0.0
    %70 = vmatpush1.msra.mxu0 %v48
    %71 = vmatprep.subr.mxu0 0.0
    %72 = vmatpush1.msra.mxu0 %v49
    %73 = vmatprep.subr.mxu0 0.0
    %74 = vmatpush1.msra.mxu0 %v50
    %75 = vmatprep.subr.mxu0 0.0
    %76 = vmatpush1.msra.mxu0 %v51
    %77 = vmatprep.subr.mxu0 0.0
    %78 = vmatpush1.msra.mxu0 %v52
    %79 = vmatprep.subr.mxu0 0.0
    %80 = vmatpush1.msra.mxu0 %v53
    %81 = vmatprep.subr.mxu0 0.0
    %82 = vmatpush1.msra.mxu0 %v54
    %83 = vmatprep.subr.mxu0 0.0
    %84 = vmatpush1.msra.mxu0 %v55
    %85 = vmatprep.subr.mxu0 0.0
    %86 = vmatpush1.msra.mxu0 %v56
    %87 = vmatprep.subr.mxu0 0.0
    %88 = vmatpush1.msra.mxu0 %v57
    %89 = vmatprep.subr.mxu0 0.0
    %90 = vmatpush1.msra.mxu0 %v58
    %91 = vmatprep.subr.mxu0 0.0
    %92 = vmatpush1.msra.mxu0 %v59
    %93 = vmatprep.subr.mxu0 0.0
    %94 = vmatpush1.msra.mxu0 %v60
    %95 = vmatprep.subr.mxu0 0.0
    %96 = vmatpush1.msra.mxu0 %v61
    %97 = vmatprep.subr.mxu0 0.0
    %98 = vmatpush1.msra.mxu0 %v62
    %99 = vmatprep.subr.mxu0 0.0
    %100 = vmatpush1.msra.mxu0 %v63
    %101 = vmatprep.subr.mxu0 0.0
    %102 = vmatpush1.msra.mxu0 0.0
    %103 = vmatprep.subr.mxu0 0.0
    %104 = vmatpush1.msra.mxu0 0.0
    %105 = vmatprep.subr.mxu0 0.0
    %106 = vmatpush1.msra.mxu0 0.0
    %107 = vmatprep.subr.mxu0 0.0
    %108 = vmatpush1.msra.mxu0 0.0
    %109 = vmatprep.subr.mxu0 0.0
    %110 = vmatpush1.msra.mxu0 0.0
    %111 = vmatprep.subr.mxu0 0.0
    %112 = vmatpush1.msra.mxu0 0.0
    %113 = vmatprep.subr.mxu0 0.0
    %114 = vmatpush1.msra.mxu0 0.0
    %115 = vmatprep.subr.mxu0 0.0
    %116 = vmatpush1.msra.mxu0 0.0
    %117 = vmatprep.subr.mxu0 0.0
    %118 = vmatpush1.msra.mxu0 0.0
    %119 = vmatprep.subr.mxu0 0.0
    %120 = vmatpush1.msra.mxu0 0.0
    %121 = vmatprep.subr.mxu0 0.0
    %122 = vmatpush1.msra.mxu0 0.0
    %123 = vmatprep.subr.mxu0 0.0
    %124 = vmatpush1.msra.mxu0 0.0
    %125 = vmatprep.subr.mxu0 0.0
    %126 = vmatpush1.msra.mxu0 0.0
    %127 = vmatprep.subr.mxu0 0.0
    %128 = vmatpush1.msra.mxu0 0.0
    %129 = vmatprep.subr.mxu0 0.0
    %130 = vmatpush1.msra.mxu0 0.0
    %131 = vmatprep.subr.mxu0 0.0
    %132 = vmatpush1.msra.mxu0 0.0
    %133 = vmatprep.mubr.f32.mxu0 0.0
    %134 = vmatmul.mubr.f32.gmra.mrb[0].mxu0 %v46
    %v135 = vpop.f32.mrb[0].mxu0
    %v136 = vadd.f32 %v68, %v135
    %v137 = vpop.f32.mrb[0].mxu0
    %138 = vdwg.mxu0
    %v139 = vmax.f32 %v136, 0.0
    %v140 = vld [vmem:[%s3 + $0x1] sm:$0x1]
    %v141 = vld [vmem:[%s3 + $0x2] sm:$0x1]
    %vm142 = vcmask 261120
    %v143 = vsel %vm142, %v139, 0.0
    %v144 = vrot.slane %v143, 4
    %v145 = vadd.f32 %v143, %v144
    %v146 = vrot.slane %v145, 2
    %v147 = vadd.f32 %v145, %v146
    %v148 = vrot.slane %v147, 1
    %v149 = vadd.f32 %v147, %v148
    %v150 = vrcp.pop 8.0
    %v151 = vmul.f32 %v149, %v150
    %v152 = vmul.f32 %v139, %v139
    %v153 = vsel %vm142, %v152, 0.0
    %v154 = vrot.slane %v153, 4
    %v155 = vadd.f32 %v153, %v154
    %v156 = vrot.slane %v155, 2
    %v157 = vadd.f32 %v155, %v156
    %v158 = vrot.slane %v157, 1
    %v159 = vadd.f32 %v157, %v158
    %v160 = vmul.f32 %v159, %v150
    %v161 = vmul.f32 %v151, %v151
    %v162 = vsub.f32 %v160, %v161
    %v163 = vadd.f32 %v162, 1e-05
    %v164 = vrsqrt.pop %v163
    %v165 = vmul.f32 %v140, %v164
    %v166 = vmul.f32 %v151, %v165
    %v167 = vsub.f32 %v141, %v166
    %v168 = vlaneseq
    %v169 = vshrl.u32 %v168, 7
    %v170 = vsub.s32 0, %v169
    %v171 = vrot.slane %v165, %v170
    %v172 = vmul.f32 %v139, %v171
    %v173 = vlaneseq
    %v174 = vshrl.u32 %v173, 7
    %v175 = vsub.s32 0, %v174
    %v176 = vrot.slane %v167, %v175
    %v177 = vadd.f32 %v172, %v176
    %s178 = scalar_lea.vmem [#allocation5], 128
    %v179 = vld [vmem:[%s178] sm:$0xff]
    %v180 = vld [vmem:[%s178 + $0x8] sm:$0xff]
    %v181 = vld [vmem:[%s178 + $0x10] sm:$0xff]
    %v182 = vld [vmem:[%s178 + $0x18] sm:$0xff]
    %v183 = vld [vmem:[%s3 + $0x3] sm:$0x1]
    %185 = vset.pattern.permute.xlu0 0
    %186 = vperm.xlu0 %185, %v177
    %v187 = vpop.permute.xlu0 %186
    %v189 = vlaneseq
    %v190 = vshrl.u32 %v189, 7
    %v191 = vsub.s32 0, %v190
    %v192 = vrot.slane %v179, %v191
    %v193 = vmul.f32 %v187, %v192
    %v194 = vlaneseq
    %v195 = vshrl.u32 %v194, 7
    %v196 = vsub.s32 0, %v195
    %v197 = vrot.slane %v183, %v196
    %v198 = vadd.f32 %v193, %v197
    %199 = vset.pattern.permute.xlu0 1
    %200 = vperm.xlu0 %199, %v177
    %v201 = vpop.permute.xlu0 %200
    %v203 = vlaneseq
    %v204 = vshrl.u32 %v203, 7
    %v205 = vsub.s32 1, %v204
    %v206 = vrot.slane %v179, %v205
    %v207 = vmul.f32 %v201, %v206
    %v208 = vadd.f32 %v198, %v207
    %209 = vset.pattern.permute.xlu0 2
    %210 = vperm.xlu0 %209, %v177
    %v211 = vpop.permute.xlu0 %210
    %v213 = vlaneseq
    %v214 = vshrl.u32 %v213, 7
    %v215 = vsub.s32 2, %v214
    %v216 = vrot.slane %v179, %v215
    %v217 = vmul.f32 %v211, %v216
    %v218 = vadd.f32 %v208, %v217
    %219 = vset.pattern.permute.xlu0 3
    %220 = vperm.xlu0 %219, %v177
    %v221 = vpop.permute.xlu0 %220
    %v223 = vlaneseq
    %v224 = vshrl.u32 %v223, 7
    %v225 = vsub.s32 3, %v224
    %v226 = vrot.slane %v179, %v225
    %v227 = vmul.f32 %v221, %v226
    %v228 = vadd.f32 %v218, %v227
    %229 = vset.pattern.permute.xlu0 4
    %230 = vperm.xlu0 %229, %v177
    %v231 = vpop.permute.xlu0 %230
    %v233 = vlaneseq
    %v234 = vshrl.u32 %v233, 7
    %v235 = vsub.s32 4, %v234
    %v236 = vrot.slane %v179, %v235
    %v237 = vmul.f32 %v231, %v236
    %v238 = vadd.f32 %v228, %v237
    %239 = vset.pattern.permute.xlu0 5
    %240 = vperm.xlu0 %239, %v177
    %v241 = vpop.permute.xlu0 %240
    %v243 = vlaneseq
    %v244 = vshrl.u32 %v243, 7
    %v245 = vsub.s32 5, %v244
    %v246 = vrot.slane %v179, %v245
    %v247 = vmul.f32 %v241, %v246
    %v248 = vadd.f32 %v238, %v247
    %249 = vset.pattern.permute.xlu0 6
    %250 = vperm.xlu0 %249, %v177
    %v251 = vpop.permute.xlu0 %250
    %v253 = vlaneseq
    %v254 = vshrl.u32 %v253, 7
    %v255 = vsub.s32 6, %v254
    %v256 = vrot.slane %v179, %v255
    %v257 = vmul.f32 %v251, %v256
    %v258 = vadd.f32 %v248, %v257
    %259 = vset.pattern.permute.xlu0 7
    %260 = vperm.xlu0 %259, %v177
    %v261 = vpop.permute.xlu0 %260
    %v263 = vlaneseq
    %v264 = vshrl.u32 %v263, 7
    %v265 = vsub.s32 7, %v264
    %v266 = vrot.slane %v179, %v265
    %v267 = vmul.f32 %v261, %v266
    %v268 = vadd.f32 %v258, %v267
    %269 = vset.pattern.permute.xlu0 8
    %270 = vperm.xlu0 %269, %v177
    %v271 = vpop.permute.xlu0 %270
    %v273 = vlaneseq
    %v274 = vshrl.u32 %v273, 7
    %v275 = vsub.s32 0, %v274
    %v276 = vrot.slane %v180, %v275
    %v277 = vmul.f32 %v271, %v276
    %v278 = vadd.f32 %v268, %v277
    %279 = vset.pattern.permute.xlu0 9
    %280 = vperm.xlu0 %279, %v177
    %v281 = vpop.permute.xlu0 %280
    %v283 = vlaneseq
    %v284 = vshrl.u32 %v283, 7
    %v285 = vsub.s32 1, %v284
    %v286 = vrot.slane %v180, %v285
    %v287 = vmul.f32 %v281, %v286
    %v288 = vadd.f32 %v278, %v287
    %289 = vset.pattern.permute.xlu0 10
    %290 = vperm.xlu0 %289, %v177
    %v291 = vpop.permute.xlu0 %290
    %v293 = vlaneseq
    %v294 = vshrl.u32 %v293, 7
    %v295 = vsub.s32 2, %v294
    %v296 = vrot.slane %v180, %v295
    %v297 = vmul.f32 %v291, %v296
    %v298 = vadd.f32 %v288, %v297
    %299 = vset.pattern.permute.xlu0 11
    %300 = vperm.xlu0 %299, %v177
    %v301 = vpop.permute.xlu0 %300
    %v303 = vlaneseq
    %v304 = vshrl.u32 %v303, 7
    %v305 = vsub.s32 3, %v304
    %v306 = vrot.slane %v180, %v305
    %v307 = vmul.f32 %v301, %v306
    %v308 = vadd.f32 %v298, %v307
    %309 = vset.pattern.permute.xlu0 12
    %310 = vperm.xlu0 %309, %v177
    %v311 = vpop.permute.xlu0 %310
    %v313 = vlaneseq
    %v314 = vshrl.u32 %v313, 7
    %v315 = vsub.s32 4, %v314
    %v316 = vrot.slane %v180, %v315
    %v317 = vmul.f32 %v311, %v316
    %v318 = vadd.f32 %v308, %v317
    %319 = vset.pattern.permute.xlu0 13
    %320 = vperm.xlu0 %319, %v177
    %v321 = vpop.permute.xlu0 %320
    %v323 = vlaneseq
    %v324 = vshrl.u32 %v323, 7
    %v325 = vsub.s32 5, %v324
    %v326 = vrot.slane %v180, %v325
    %v327 = vmul.f32 %v321, %v326
    %v328 = vadd.f32 %v318, %v327
    %329 = vset.pattern.permute.xlu0 14
    %330 = vperm.xlu0 %329, %v177
    %v331 = vpop.permute.xlu0 %330
    %v333 = vlaneseq
    %v334 = vshrl.u32 %v333, 7
    %v335 = vsub.s32 6, %v334
    %v336 = vrot.slane %v180, %v335
    %v337 = vmul.f32 %v331, %v336
    %v338 = vadd.f32 %v328, %v337
    %339 = vset.pattern.permute.xlu0 15
    %340 = vperm.xlu0 %339, %v177
    %v341 = vpop.permute.xlu0 %340
    %v343 = vlaneseq
    %v344 = vshrl.u32 %v343, 7
    %v345 = vsub.s32 7, %v344
    %v346 = vrot.slane %v180, %v345
    %v347 = vmul.f32 %v341, %v346
    %v348 = vadd.f32 %v338, %v347
    %349 = vset.pattern.permute.xlu0 16
    %350 = vperm.xlu0 %349, %v177
    %v351 = vpop.permute.xlu0 %350
    %v353 = vlaneseq
    %v354 = vshrl.u32 %v353, 7
    %v355 = vsub.s32 0, %v354
    %v356 = vrot.slane %v181, %v355
    %v357 = vmul.f32 %v351, %v356
    %v358 = vadd.f32 %v348, %v357
    %359 = vset.pattern.permute.xlu0 17
    %360 = vperm.xlu0 %359, %v177
    %v361 = vpop.permute.xlu0 %360
    %v363 = vlaneseq
    %v364 = vshrl.u32 %v363, 7
    %v365 = vsub.s32 1, %v364
    %v366 = vrot.slane %v181, %v365
    %v367 = vmul.f32 %v361, %v366
    %v368 = vadd.f32 %v358, %v367
    %369 = vset.pattern.permute.xlu0 18
    %370 = vperm.xlu0 %369, %v177
    %v371 = vpop.permute.xlu0 %370
    %v373 = vlaneseq
    %v374 = vshrl.u32 %v373, 7
    %v375 = vsub.s32 2, %v374
    %v376 = vrot.slane %v181, %v375
    %v377 = vmul.f32 %v371, %v376
    %v378 = vadd.f32 %v368, %v377
    %379 = vset.pattern.permute.xlu0 19
    %380 = vperm.xlu0 %379, %v177
    %v381 = vpop.permute.xlu0 %380
    %v383 = vlaneseq
    %v384 = vshrl.u32 %v383, 7
    %v385 = vsub.s32 3, %v384
    %v386 = vrot.slane %v181, %v385
    %v387 = vmul.f32 %v381, %v386
    %v388 = vadd.f32 %v378, %v387
    %389 = vset.pattern.permute.xlu0 20
    %390 = vperm.xlu0 %389, %v177
    %v391 = vpop.permute.xlu0 %390
    %v393 = vlaneseq
    %v394 = vshrl.u32 %v393, 7
    %v395 = vsub.s32 4, %v394
    %v396 = vrot.slane %v181, %v395
    %v397 = vmul.f32 %v391, %v396
    %v398 = vadd.f32 %v388, %v397
    %399 = vset.pattern.permute.xlu0 21
    %400 = vperm.xlu0 %399, %v177
    %v401 = vpop.permute.xlu0 %400
    %v403 = vlaneseq
    %v404 = vshrl.u32 %v403, 7
    %v405 = vsub.s32 5, %v404
    %v406 = vrot.slane %v181, %v405
    %v407 = vmul.f32 %v401, %v406
    %v408 = vadd.f32 %v398, %v407
    %409 = vset.pattern.permute.xlu0 22
    %410 = vperm.xlu0 %409, %v177
    %v411 = vpop.permute.xlu0 %410
    %v413 = vlaneseq
    %v414 = vshrl.u32 %v413, 7
    %v415 = vsub.s32 6, %v414
    %v416 = vrot.slane %v181, %v415
    %v417 = vmul.f32 %v411, %v416
    %v418 = vadd.f32 %v408, %v417
    %419 = vset.pattern.permute.xlu0 23
    %420 = vperm.xlu0 %419, %v177
    %v421 = vpop.permute.xlu0 %420
    %v423 = vlaneseq
    %v424 = vshrl.u32 %v423, 7
    %v425 = vsub.s32 7, %v424
    %v426 = vrot.slane %v181, %v425
    %v427 = vmul.f32 %v421, %v426
    %v428 = vadd.f32 %v418, %v427
    %429 = vset.pattern.permute.xlu0 24
    %430 = vperm.xlu0 %429, %v177
    %v431 = vpop.permute.xlu0 %430
    %v433 = vlaneseq
    %v434 = vshrl.u32 %v433, 7
    %v435 = vsub.s32 0, %v434
    %v436 = vrot.slane %v182, %v435
    %v437 = vmul.f32 %v431, %v436
    %v438 = vadd.f32 %v428, %v437
    %439 = vset.pattern.permute.xlu0 25
    %440 = vperm.xlu0 %439, %v177
    %v441 = vpop.permute.xlu0 %440
    %v443 = vlaneseq
    %v444 = vshrl.u32 %v443, 7
    %v445 = vsub.s32 1, %v444
    %v446 = vrot.slane %v182, %v445
    %v447 = vmul.f32 %v441, %v446
    %v448 = vadd.f32 %v438, %v447
    %449 = vset.pattern.permute.xlu0 26
    %450 = vperm.xlu0 %449, %v177
    %v451 = vpop.permute.xlu0 %450
    %v453 = vlaneseq
    %v454 = vshrl.u32 %v453, 7
    %v455 = vsub.s32 2, %v454
    %v456 = vrot.slane %v182, %v455
    %v457 = vmul.f32 %v451, %v456
    %v458 = vadd.f32 %v448, %v457
    %459 = vset.pattern.permute.xlu0 27
    %460 = vperm.xlu0 %459, %v177
    %v461 = vpop.permute.xlu0 %460
    %v463 = vlaneseq
    %v464 = vshrl.u32 %v463, 7
    %v465 = vsub.s32 3, %v464
    %v466 = vrot.slane %v182, %v465
    %v467 = vmul.f32 %v461, %v466
    %v468 = vadd.f32 %v458, %v467
    %469 = vset.pattern.permute.xlu0 28
    %470 = vperm.xlu0 %469, %v177
    %v471 = vpop.permute.xlu0 %470
    %v473 = vlaneseq
    %v474 = vshrl.u32 %v473, 7
    %v475 = vsub.s32 4, %v474
    %v476 = vrot.slane %v182, %v475
    %v477 = vmul.f32 %v471, %v476
    %v478 = vadd.f32 %v468, %v477
    %479 = vset.pattern.permute.xlu0 29
    %480 = vperm.xlu0 %479, %v177
    %v481 = vpop.permute.xlu0 %480
    %v483 = vlaneseq
    %v484 = vshrl.u32 %v483, 7
    %v485 = vsub.s32 5, %v484
    %v486 = vrot.slane %v182, %v485
    %v487 = vmul.f32 %v481, %v486
    %v488 = vadd.f32 %v478, %v487
    %489 = vset.pattern.permute.xlu0 30
    %490 = vperm.xlu0 %489, %v177
    %v491 = vpop.permute.xlu0 %490
    %v493 = vlaneseq
    %v494 = vshrl.u32 %v493, 7
    %v495 = vsub.s32 6, %v494
    %v496 = vrot.slane %v182, %v495
    %v497 = vmul.f32 %v491, %v496
    %v498 = vadd.f32 %v488, %v497
    %499 = vset.pattern.permute.xlu0 31
    %500 = vperm.xlu0 %499, %v177
    %v501 = vpop.permute.xlu0 %500
    %v503 = vlaneseq
    %v504 = vshrl.u32 %v503, 7
    %v505 = vsub.s32 7, %v504
    %v506 = vrot.slane %v182, %v505
    %v507 = vmul.f32 %v501, %v506
    %v508 = vadd.f32 %v498, %v507
    %v509 = vmax.f32 %v508, 0.0
    %v510 = vld [vmem:[%s3 + $0x4] sm:$0x1]
    %v511 = vld [vmem:[%s3 + $0x5] sm:$0x1]
    %vm512 = vcmask 64512
    %v513 = vsel %vm512, %v509, 0.0
    %v514 = vrot.slane %v513, 4
    %v515 = vadd.f32 %v513, %v514
    %v516 = vrot.slane %v515, 2
    %v517 = vadd.f32 %v515, %v516
    %v518 = vrot.slane %v517, 1
    %v519 = vadd.f32 %v517, %v518
    %v520 = vmul.f32 %v519, %v150
    %v521 = vmul.f32 %v509, %v509
    %v522 = vsel %vm512, %v521, 0.0
    %v523 = vrot.slane %v522, 4
    %v524 = vadd.f32 %v522, %v523
    %v525 = vrot.slane %v524, 2
    %v526 = vadd.f32 %v524, %v525
    %v527 = vrot.slane %v526, 1
    %v528 = vadd.f32 %v526, %v527
    %v529 = vmul.f32 %v528, %v150
    %v530 = vmul.f32 %v520, %v520
    %v531 = vsub.f32 %v529, %v530
    %v532 = vadd.f32 %v531, 1e-05
    %v533 = vrsqrt.pop %v532
    %v534 = vmul.f32 %v510, %v533
    %v535 = vmul.f32 %v520, %v534
    %v536 = vsub.f32 %v511, %v535
    %v537 = vlaneseq
    %v538 = vshrl.u32 %v537, 7
    %v539 = vsub.s32 0, %v538
    %v540 = vrot.slane %v534, %v539
    %v541 = vmul.f32 %v509, %v540
    %v542 = vlaneseq
    %v543 = vshrl.u32 %v542, 7
    %v544 = vsub.s32 0, %v543
    %v545 = vrot.slane %v536, %v544
    %v546 = vadd.f32 %v541, %v545
    %s547 = scalar_lea.vmem [#allocation5], 256
    %v548 = vld [vmem:[%s547] sm:$0xff]
    %v549 = vld [vmem:[%s3 + $0x6] sm:$0x1]
    %551 = vset.pattern.permute.xlu0 0
    %552 = vperm.xlu0 %551, %v546
    %v553 = vpop.permute.xlu0 %552
    %v555 = vlaneseq
    %v556 = vshrl.u32 %v555, 7
    %v557 = vsub.s32 0, %v556
    %v558 = vrot.slane %v548, %v557
    %v559 = vmul.f32 %v553, %v558
    %v560 = vlaneseq
    %v561 = vshrl.u32 %v560, 7
    %v562 = vsub.s32 0, %v561
    %v563 = vrot.slane %v549, %v562
    %v564 = vadd.f32 %v559, %v563
    %565 = vset.pattern.permute.xlu0 1
    %566 = vperm.xlu0 %565, %v546
    %v567 = vpop.permute.xlu0 %566
    %v569 = vlaneseq
    %v570 = vshrl.u32 %v569, 7
    %v571 = vsub.s32 1, %v570
    %v572 = vrot.slane %v548, %v571
    %v573 = vmul.f32 %v567, %v572
    %v574 = vadd.f32 %v564, %v573
    %575 = vset.pattern.permute.xlu0 2
    %576 = vperm.xlu0 %575, %v546
    %v577 = vpop.permute.xlu0 %576
    %v579 = vlaneseq
    %v580 = vshrl.u32 %v579, 7
    %v581 = vsub.s32 2, %v580
    %v582 = vrot.slane %v548, %v581
    %v583 = vmul.f32 %v577, %v582
    %v584 = vadd.f32 %v574, %v583
    %585 = vset.pattern.permute.xlu0 3
    %586 = vperm.xlu0 %585, %v546
    %v587 = vpop.permute.xlu0 %586
    %v589 = vlaneseq
    %v590 = vshrl.u32 %v589, 7
    %v591 = vsub.s32 3, %v590
    %v592 = vrot.slane %v548, %v591
    %v593 = vmul.f32 %v587, %v592
    %v594 = vadd.f32 %v584, %v593
    %595 = vset.pattern.permute.xlu0 4
    %596 = vperm.xlu0 %595, %v546
    %v597 = vpop.permute.xlu0 %596
    %v599 = vlaneseq
    %v600 = vshrl.u32 %v599, 7
    %v601 = vsub.s32 4, %v600
    %v602 = vrot.slane %v548, %v601
    %v603 = vmul.f32 %v597, %v602
    %v604 = vadd.f32 %v594, %v603
    %605 = vset.pattern.permute.xlu0 5
    %606 = vperm.xlu0 %605, %v546
    %v607 = vpop.permute.xlu0 %606
    %v609 = vlaneseq
    %v610 = vshrl.u32 %v609, 7
    %v611 = vsub.s32 5, %v610
    %v612 = vrot.slane %v548, %v611
    %v613 = vmul.f32 %v607, %v612
    %v614 = vadd.f32 %v604, %v613
    %615 = vset.pattern.permute.xlu0 6
    %616 = vperm.xlu0 %615, %v546
    %v617 = vpop.permute.xlu0 %616
    %v619 = vlaneseq
    %v620 = vshrl.u32 %v619, 7
    %v621 = vsub.s32 6, %v620
    %v622 = vrot.slane %v548, %v621
    %v623 = vmul.f32 %v617, %v622
    %v624 = vadd.f32 %v614, %v623
    %625 = vset.pattern.permute.xlu0 7
    %626 = vperm.xlu0 %625, %v546
    %v627 = vpop.permute.xlu0 %626
    %v629 = vlaneseq
    %v630 = vshrl.u32 %v629, 7
    %v631 = vsub.s32 7, %v630
    %v632 = vrot.slane %v548, %v631
    %v633 = vmul.f32 %v627, %v632
    %v634 = vadd.f32 %v624, %v633
    %v635 = vld [vmem:[%s3 + $0x7] sm:$0x1]
    %v636 = vld [vmem:[%s3 + $0x8] sm:$0x1]
    %vm637 = vcmask 31744
    %v638 = vsel %vm637, %v634, 0.0
    %v639 = vrot.slane %v638, 4
    %v640 = vadd.f32 %v638, %v639
    %v641 = vrot.slane %v640, 2
    %v642 = vadd.f32 %v640, %v641
    %v643 = vrot.slane %v642, 1
    %v644 = vadd.f32 %v642, %v643
    %v645 = vmul.f32 %v644, %v150
    %v646 = vmul.f32 %v634, %v634
    %v647 = vsel %vm637, %v646, 0.0
    %v648 = vrot.slane %v647, 4
    %v649 = vadd.f32 %v647, %v648
    %v650 = vrot.slane %v649, 2
    %v651 = vadd.f32 %v649, %v650
    %v652 = vrot.slane %v651, 1
    %v653 = vadd.f32 %v651, %v652
    %v654 = vmul.f32 %v653, %v150
    %v655 = vmul.f32 %v645, %v645
    %v656 = vsub.f32 %v654, %v655
    %v657 = vadd.f32 %v656, 1e-05
    %v658 = vrsqrt.pop %v657
    %v659 = vmul.f32 %v635, %v658
    %v660 = vmul.f32 %v645, %v659
    %v661 = vsub.f32 %v636, %v660
    %v662 = vlaneseq
    %v663 = vshrl.u32 %v662, 7
    %v664 = vsub.s32 0, %v663
    %v665 = vrot.slane %v659, %v664
    %v666 = vmul.f32 %v634, %v665
    %v667 = vlaneseq
    %v668 = vshrl.u32 %v667, 7
    %v669 = vsub.s32 0, %v668
    %v670 = vrot.slane %v661, %v669
    %v671 = vadd.f32 %v666, %v670
    %v672 = vmul.f32 %v671, 0.5
    %v673 = vmul.f32 %v672, 1.442695
    %v674 = vpow.pop %v673
    %676 = vrot.lane.b32.xlu0 %v674, 126
    %v677 = vpop.permute.xlu0 %676
    %v679 = vmul.f32 %v47, %v677
    %v680 = vadd.f32 %v679, %v671
    %s681 = scalar_lea.vmem [#allocation5], 384
    %v682 = vld [vmem:[%s681] sm:$0x3]
    %v683 = vld [vmem:[%s3 + $0x9] sm:$0x1]
    %685 = vset.pattern.permute.xlu0 0
    %686 = vperm.xlu0 %685, %v680
    %v687 = vpop.permute.xlu0 %686
    %v689 = vlaneseq
    %v690 = vshrl.u32 %v689, 7
    %v691 = vsub.s32 0, %v690
    %v692 = vrot.slane %v682, %v691
    %v693 = vmul.f32 %v687, %v692
    %v694 = vlaneseq
    %v695 = vshrl.u32 %v694, 7
    %v696 = vsub.s32 0, %v695
    %v697 = vrot.slane %v683, %v696
    %v698 = vadd.f32 %v693, %v697
    %699 = vset.pattern.permute.xlu0 1
    %700 = vperm.xlu0 %699, %v680
    %v701 = vpop.permute.xlu0 %700
    %v703 = vlaneseq
    %v704 = vshrl.u32 %v703, 7
    %v705 = vsub.s32 1, %v704
    %v706 = vrot.slane %v682, %v705
    %v707 = vmul.f32 %v701, %v706
    %v708 = vadd.f32 %v698, %v707
    %v709 = vmax.f32 %v708, 0.0
    %v710 = vld [vmem:[%s3 + $0xa] sm:$0x1]
    %v711 = vld [vmem:[%s3 + $0xb] sm:$0x1]
    %v712 = vsel %vm512, %v709, 0.0
    %v713 = vrot.slane %v712, 4
    %v714 = vadd.f32 %v712, %v713
    %v715 = vrot.slane %v714, 2
    %v716 = vadd.f32 %v714, %v715
    %v717 = vrot.slane %v716, 1
    %v718 = vadd.f32 %v716, %v717
    %v719 = vmul.f32 %v718, %v150
    %v720 = vmul.f32 %v709, %v709
    %v721 = vsel %vm512, %v720, 0.0
    %v722 = vrot.slane %v721, 4
    %v723 = vadd.f32 %v721, %v722
    %v724 = vrot.slane %v723, 2
    %v725 = vadd.f32 %v723, %v724
    %v726 = vrot.slane %v725, 1
    %v727 = vadd.f32 %v725, %v726
    %v728 = vmul.f32 %v727, %v150
    %v729 = vmul.f32 %v719, %v719
    %v730 = vsub.f32 %v728, %v729
    %v731 = vadd.f32 %v730, 1e-05
    %v732 = vrsqrt.pop %v731
    %v733 = vmul.f32 %v710, %v732
    %v734 = vmul.f32 %v719, %v733
    %v735 = vsub.f32 %v711, %v734
    %v736 = vlaneseq
    %v737 = vshrl.u32 %v736, 7
    %v738 = vsub.s32 0, %v737
    %v739 = vrot.slane %v733, %v738
    %v740 = vmul.f32 %v709, %v739
    %v741 = vlaneseq
    %v742 = vshrl.u32 %v741, 7
    %v743 = vsub.s32 0, %v742
    %v744 = vrot.slane %v735, %v743
    %v745 = vadd.f32 %v740, %v744
    %s746 = scalar_lea.vmem [#allocation5], 512
    %v747 = vld [vmem:[%s746] sm:$0xff]
    %v748 = vld [vmem:[%s3 + $0xc] sm:$0x1]
    %750 = vset.pattern.permute.xlu0 0
    %751 = vperm.xlu0 %750, %v745
    %v752 = vpop.permute.xlu0 %751
    %v754 = vlaneseq
    %v755 = vshrl.u32 %v754, 7
    %v756 = vsub.s32 0, %v755
    %v757 = vrot.slane %v747, %v756
    %v758 = vmul.f32 %v752, %v757
    %v759 = vlaneseq
    %v760 = vshrl.u32 %v759, 7
    %v761 = vsub.s32 0, %v760
    %v762 = vrot.slane %v748, %v761
    %v763 = vadd.f32 %v758, %v762
    %764 = vset.pattern.permute.xlu0 1
    %765 = vperm.xlu0 %764, %v745
    %v766 = vpop.permute.xlu0 %765
    %v768 = vlaneseq
    %v769 = vshrl.u32 %v768, 7
    %v770 = vsub.s32 1, %v769
    %v771 = vrot.slane %v747, %v770
    %v772 = vmul.f32 %v766, %v771
    %v773 = vadd.f32 %v763, %v772
    %774 = vset.pattern.permute.xlu0 2
    %775 = vperm.xlu0 %774, %v745
    %v776 = vpop.permute.xlu0 %775
    %v778 = vlaneseq
    %v779 = vshrl.u32 %v778, 7
    %v780 = vsub.s32 2, %v779
    %v781 = vrot.slane %v747, %v780
    %v782 = vmul.f32 %v776, %v781
    %v783 = vadd.f32 %v773, %v782
    %784 = vset.pattern.permute.xlu0 3
    %785 = vperm.xlu0 %784, %v745
    %v786 = vpop.permute.xlu0 %785
    %v788 = vlaneseq
    %v789 = vshrl.u32 %v788, 7
    %v790 = vsub.s32 3, %v789
    %v791 = vrot.slane %v747, %v790
    %v792 = vmul.f32 %v786, %v791
    %v793 = vadd.f32 %v783, %v792
    %794 = vset.pattern.permute.xlu0 4
    %795 = vperm.xlu0 %794, %v745
    %v796 = vpop.permute.xlu0 %795
    %v798 = vlaneseq
    %v799 = vshrl.u32 %v798, 7
    %v800 = vsub.s32 4, %v799
    %v801 = vrot.slane %v747, %v800
    %v802 = vmul.f32 %v796, %v801
    %v803 = vadd.f32 %v793, %v802
    %804 = vset.pattern.permute.xlu0 5
    %805 = vperm.xlu0 %804, %v745
    %v806 = vpop.permute.xlu0 %805
    %v808 = vlaneseq
    %v809 = vshrl.u32 %v808, 7
    %v810 = vsub.s32 5, %v809
    %v811 = vrot.slane %v747, %v810
    %v812 = vmul.f32 %v806, %v811
    %v813 = vadd.f32 %v803, %v812
    %814 = vset.pattern.permute.xlu0 6
    %815 = vperm.xlu0 %814, %v745
    %v816 = vpop.permute.xlu0 %815
    %v818 = vlaneseq
    %v819 = vshrl.u32 %v818, 7
    %v820 = vsub.s32 6, %v819
    %v821 = vrot.slane %v747, %v820
    %v822 = vmul.f32 %v816, %v821
    %v823 = vadd.f32 %v813, %v822
    %824 = vset.pattern.permute.xlu0 7
    %825 = vperm.xlu0 %824, %v745
    %v826 = vpop.permute.xlu0 %825
    %v828 = vlaneseq
    %v829 = vshrl.u32 %v828, 7
    %v830 = vsub.s32 7, %v829
    %v831 = vrot.slane %v747, %v830
    %v832 = vmul.f32 %v826, %v831
    %v833 = vadd.f32 %v823, %v832
    %v834 = vmax.f32 %v833, 0.0
    %v835 = vld [vmem:[%s3 + $0xd] sm:$0x1]
    %v836 = vld [vmem:[%s3 + $0xe] sm:$0x1]
    %v837 = vsel %vm142, %v834, 0.0
    %v838 = vrot.slane %v837, 4
    %v839 = vadd.f32 %v837, %v838
    %v840 = vrot.slane %v839, 2
    %v841 = vadd.f32 %v839, %v840
    %v842 = vrot.slane %v841, 1
    %v843 = vadd.f32 %v841, %v842
    %v844 = vmul.f32 %v843, %v150
    %v845 = vmul.f32 %v834, %v834
    %v846 = vsel %vm142, %v845, 0.0
    %v847 = vrot.slane %v846, 4
    %v848 = vadd.f32 %v846, %v847
    %v849 = vrot.slane %v848, 2
    %v850 = vadd.f32 %v848, %v849
    %v851 = vrot.slane %v850, 1
    %v852 = vadd.f32 %v850, %v851
    %v853 = vmul.f32 %v852, %v150
    %v854 = vmul.f32 %v844, %v844
    %v855 = vsub.f32 %v853, %v854
    %v856 = vadd.f32 %v855, 1e-05
    %v857 = vrsqrt.pop %v856
    %v858 = vmul.f32 %v835, %v857
    %v859 = vmul.f32 %v844, %v858
    %v860 = vsub.f32 %v836, %v859
    %v861 = vlaneseq
    %v862 = vshrl.u32 %v861, 7
    %v863 = vsub.s32 0, %v862
    %v864 = vrot.slane %v858, %v863
    %v865 = vmul.f32 %v834, %v864
    %v866 = vlaneseq
    %v867 = vshrl.u32 %v866, 7
    %v868 = vsub.s32 0, %v867
    %v869 = vrot.slane %v860, %v868
    %v870 = vadd.f32 %v865, %v869
    %s871 = scalar_lea.vmem [#allocation5], 640
    %v872 = vld [vmem:[%s871] sm:$0xff]
    %v873 = vld [vmem:[%s871 + $0x8] sm:$0xff]
    %v874 = vld [vmem:[%s871 + $0x10] sm:$0xff]
    %v875 = vld [vmem:[%s871 + $0x18] sm:$0xff]
    %v876 = vld [vmem:[%s3 + $0xf] sm:$0x1]
    %v877 = vlaneseq
    %v878 = vshrl.u32 %v877, 7
    %v879 = vsub.s32 0, %v878
    %v880 = vrot.slane %v876, %v879
    %v882 = vsel %vm142, %v870, 0
    %884 = vmatprep.subr.mxu0 0.0
    %885 = vmatpush1.msra.mxu0 %v872
    %886 = vmatprep.subr.mxu0 0.0
    %887 = vmatpush1.msra.mxu0 %v873
    %888 = vmatprep.subr.mxu0 0.0
    %889 = vmatpush1.msra.mxu0 %v874
    %890 = vmatprep.subr.mxu0 0.0
    %891 = vmatpush1.msra.mxu0 %v875
    %892 = vmatprep.subr.mxu0 0.0
    %893 = vmatpush1.msra.mxu0 0.0
    %894 = vmatprep.subr.mxu0 0.0
    %895 = vmatpush1.msra.mxu0 0.0
    %896 = vmatprep.subr.mxu0 0.0
    %897 = vmatpush1.msra.mxu0 0.0
    %898 = vmatprep.subr.mxu0 0.0
    %899 = vmatpush1.msra.mxu0 0.0
    %900 = vmatprep.subr.mxu0 0.0
    %901 = vmatpush1.msra.mxu0 0.0
    %902 = vmatprep.subr.mxu0 0.0
    %903 = vmatpush1.msra.mxu0 0.0
    %904 = vmatprep.subr.mxu0 0.0
    %905 = vmatpush1.msra.mxu0 0.0
    %906 = vmatprep.subr.mxu0 0.0
    %907 = vmatpush1.msra.mxu0 0.0
    %908 = vmatprep.subr.mxu0 0.0
    %909 = vmatpush1.msra.mxu0 0.0
    %910 = vmatprep.subr.mxu0 0.0
    %911 = vmatpush1.msra.mxu0 0.0
    %912 = vmatprep.subr.mxu0 0.0
    %913 = vmatpush1.msra.mxu0 0.0
    %914 = vmatprep.subr.mxu0 0.0
    %915 = vmatpush1.msra.mxu0 0.0
    %916 = vmatprep.subr.mxu0 0.0
    %917 = vmatpush1.msra.mxu0 0.0
    %918 = vmatprep.subr.mxu0 0.0
    %919 = vmatpush1.msra.mxu0 0.0
    %920 = vmatprep.subr.mxu0 0.0
    %921 = vmatpush1.msra.mxu0 0.0
    %922 = vmatprep.subr.mxu0 0.0
    %923 = vmatpush1.msra.mxu0 0.0
    %924 = vmatprep.subr.mxu0 0.0
    %925 = vmatpush1.msra.mxu0 0.0
    %926 = vmatprep.subr.mxu0 0.0
    %927 = vmatpush1.msra.mxu0 0.0
    %928 = vmatprep.subr.mxu0 0.0
    %929 = vmatpush1.msra.mxu0 0.0
    %930 = vmatprep.subr.mxu0 0.0
    %931 = vmatpush1.msra.mxu0 0.0
    %932 = vmatprep.subr.mxu0 0.0
    %933 = vmatpush1.msra.mxu0 0.0
    %934 = vmatprep.subr.mxu0 0.0
    %935 = vmatpush1.msra.mxu0 0.0
    %936 = vmatprep.subr.mxu0 0.0
    %937 = vmatpush1.msra.mxu0 0.0
    %938 = vmatprep.subr.mxu0 0.0
    %939 = vmatpush1.msra.mxu0 0.0
    %940 = vmatprep.subr.mxu0 0.0
    %941 = vmatpush1.msra.mxu0 0.0
    %942 = vmatprep.subr.mxu0 0.0
    %943 = vmatpush1.msra.mxu0 0.0
    %944 = vmatprep.subr.mxu0 0.0
    %945 = vmatpush1.msra.mxu0 0.0
    %946 = vmatprep.subr.mxu0 0.0
    %947 = vmatpush1.msra.mxu0 0.0
    %948 = vmatprep.mubr.f32.mxu0 0.0
    %949 = vmatmul.mubr.f32.gmra.mrb[0].mxu0 %v882
    %v950 = vpop.f32.mrb[0].mxu0
    %v951 = vadd.f32 %v880, %v950
    %v952 = vpop.f32.mrb[0].mxu0
    %953 = vdwg.mxu0
    %v954 = vsub.f32 0.0, %v951
    %v955 = vmul.f32 %v954, 1.442695
    %v956 = vpow.pop %v955
    %v957 = vadd.f32 %v956, 1.0
    %v958 = vrcp.pop %v957
    %959 = vst [vmem:[#allocation7] sm:$0xff] %v958
    %v960 = vlaneseq
    %v961 = vand.u32 %v960, 127
    %vm962 = vcmp.eq.s32.totalorder %v961, 0
    %v963 = vsel %vm962, %v687, 0.0
    %v964 = vadd.f32 %v963, 0.0
    %vm965 = vcmp.eq.s32.totalorder %v961, 2
    %967 = vset.pattern.permute.xlu0 0
    %968 = vperm.xlu0 %967, %v671
    %v969 = vpop.permute.xlu0 %968
    %v971 = vsel %vm965, %v969, 0.0
    %v972 = vadd.f32 %v964, %v971
    %vm973 = vcmp.eq.s32.totalorder %v961, 4
    %974 = vset.pattern.permute.xlu0 2
    %975 = vperm.xlu0 %974, %v671
    %v976 = vpop.permute.xlu0 %975
    %v978 = vsel %vm973, %v976, 0.0
    %v979 = vadd.f32 %v972, %v978
    %vm980 = vcmp.eq.s32.totalorder %v961, 1
    %v981 = vsel %vm980, %v701, 0.0
    %v982 = vadd.f32 %v979, %v981
    %vm983 = vcmp.eq.s32.totalorder %v961, 3
    %984 = vset.pattern.permute.xlu0 1
    %985 = vperm.xlu0 %984, %v671
    %v986 = vpop.permute.xlu0 %985
    %v988 = vsel %vm983, %v986, 0.0
    %v989 = vadd.f32 %v982, %v988
    %vm990 = vcmp.eq.s32.totalorder %v961, 5
    %991 = vset.pattern.permute.xlu0 3
    %992 = vperm.xlu0 %991, %v671
    %v993 = vpop.permute.xlu0 %992
    %v995 = vsel %vm990, %v993, 0.0
    %v996 = vadd.f32 %v989, %v995
    %997 = vst [vmem:[%s5] sm:$0xff] %v996
    // Predicated region
    $region26: #{vae_forward.1} parent=1 // pred_check
      _
    $region27: #{vae_forward.1} parent=1 // pred_check_branch
      %999 = sbr.rel (0) target = $region29
    $region28: #{vae_forward.1} parent=1 // pred_region
      %s1001 = ssub.s32 128, 128
      %1002 = vsyncadd [#allocation4], %s1001
      %s1004 = sshll.u32 [#allocation7], 4
      %s1005 = int_to_ptr.vmem [resolvable:$true] %s1004
      %1007 = dma.vmem_to_hbm [thread:$0]  %s1005, 128, %s4, [#allocation4]
    $region29: #{vae_forward.1} parent=1 // pred_fallthru
      _
    // Predicated region
    $region30: #{vae_forward.1} parent=1 // pred_check
      _
    $region31: #{vae_forward.1} parent=1 // pred_check_branch
      %1009 = sbr.rel (0) target = $region33
    $region32: #{vae_forward.1} parent=1 // pred_region
      _
    $region33: #{vae_forward.1} parent=1 // pred_fallthru
      _
    // Predicated region
    $region34: #{vae_forward.1} parent=1 // pred_check
      _
    $region35: #{vae_forward.1} parent=1 // pred_check_branch
      %1011 = sbr.rel (0) target = $region37
    $region36: #{vae_forward.1} parent=1 // pred_region
      %1012 = dma.done [#allocation4], 128
    $region37: #{vae_forward.1} parent=1 // pred_fallthru
      _
    // Predicated region
    $region38: #{vae_forward.1} parent=1 // pred_check
      _
    $region39: #{vae_forward.1} parent=1 // pred_check_branch
      %1014 = sbr.rel (0) target = $region41
    $region40: #{vae_forward.1} parent=1 // pred_region
      _
    $region41: #{vae_forward.1} parent=1 // pred_fallthru
      _
    %1015 = vsyncpa [#allocation3], 1
    %1016 = vsyncpa [#allocation6], 1
    %1017 = vsyncpa [#allocation4], 1

</llo_original>
